<compile_context>
chip_gen: v7x
topology: tpu7x:2x2x1
jax: 0.10.0
libtpu: 0.0.40
codegen_flags: <defaults>
</compile_context>

<pallas_src>
import functools

import jax
import jax.numpy as jnp
from jax.experimental import pallas as pl
from jax.experimental.pallas import tpu as pltpu

NUM_FEATURES = 5
F_PAD = 8                # feature dim padded to the sublane granule
TILE_B = 2048            # batch (lane) tile; large => overhead/weight pushes amortized
USE_BF16_MATMUL = True   # bf16 MXU operands, f32 accumulate


def _device_kind() -> str:
    try:
        return jax.devices()[0].device_kind.lower()
    except Exception:  # pragma: no cover - keep import robust
        return ""


_KIND = _device_kind()
IS_V5 = "v5" in _KIND
IS_V7 = ("v7" in _KIND) or ("7x" in _KIND)

# MXU operand dtype and VPU-epilogue / inter-layer activation dtype.
MXU_DT = jnp.bfloat16 if USE_BF16_MATMUL else jnp.float32
EPI_DT = jnp.float32 if (IS_V5 or not USE_BF16_MATMUL) else jnp.bfloat16
VMEM_LIMIT_BYTES = (32 if IS_V7 else 64) * 1024 * 1024


def _cdiv(a, b):
    return -(-a // b)


def _round_up(a, m):
    return _cdiv(a, m) * m


def mlp_kernel(x_ref,
               w1_ref, b1_ref,
               w2_ref, b2_ref,
               w3_ref, b3_ref,
               w4_ref, b4_ref,
               w5t_ref, b5_ref,
               o_ref):
    """One batch tile.
    x_ref: (F_PAD, TB) f32; w*_ref: (out, in) MXU_DT (pre-cast in wrapper);
    b*_ref: (out, 1) EPI_DT; w5t_ref: (128, 1) f32; b5_ref: (1, 1) f32;
    o_ref: (1, TB) f32."""

    def hidden(w_ref, b_ref, h):
        # Weights already MXU_DT (no per-step cast); f32 MXU accumulate; then a
        # single cast and a bf16 (or f32 on v5e) bias-add + ReLU on the VPU.
        y = jnp.dot(w_ref[...], h, preferred_element_type=jnp.float32)
        y = y.astype(EPI_DT) + b_ref[...]
        return jnp.maximum(y, 0.0).astype(MXU_DT)

    h = x_ref[...].astype(MXU_DT)       # (F_PAD, TB)
    h = hidden(w1_ref, b1_ref, h)       # (128, TB)
    h = hidden(w2_ref, b2_ref, h)       # (256, TB)
    h = hidden(w3_ref, b3_ref, h)       # (256, TB)
    h = hidden(w4_ref, b4_ref, h)       # (128, TB)

    # Final 128 -> 1 layer: VPU multiply + sublane reduce (f32) -> lane-dense
    # (1, TB) store instead of a width-1 MXU matmul with a masked vst.
    out = jnp.sum(w5t_ref[...] * h, axis=0, keepdims=True) + b5_ref[...]
    o_ref[...] = out.astype(o_ref.dtype)


@functools.partial(jax.jit, static_argnames=("tile_b",))
def simple_mlp_forward(x, params, tile_b=TILE_B):
    """x: (B, NUM_FEATURES) f32.  params: [(W, b)] with W (out, in), b (out,)
    in PyTorch nn.Linear layout.  Returns (B, 1) f32."""
    x = jnp.asarray(x, jnp.float32)
    B, F = x.shape
    tile_b = _round_up(int(tile_b), 128)

    # Tile selection: lane-aligned, latency path for small B, and >= 2 tiles on
    # v7x (parallel grid axis -> both TensorCores) when B is large enough.
    min_tiles = 2 if (IS_V7 and B > 512) else 1
    if B <= tile_b and min_tiles == 1:
        tb = _round_up(max(B, 1), 128)
        nb = 1
    else:
        tb = max(128, min(tile_b, _round_up(_cdiv(B, min_tiles), 128)))
        nb = _cdiv(B, tb)
    b_pad = nb * tb

    # Transpose to (features, batch): batch lives on the lane axis throughout.
    # (Under jit this pad+transpose fuses with the pallas_call dispatch.)
    x_t = jnp.zeros((F_PAD, b_pad), jnp.float32).at[:F, :B].set(x.T)

    (w1, b1), (w2, b2), (w3, b3), (w4, b4), (w5, b5) = params
    # Zero-pad layer-1 in-features 5 -> 8 (zero columns contribute nothing),
    # and pre-cast all hidden-layer weights/biases to their kernel dtypes once.
    w1p = jnp.zeros((w1.shape[0], F_PAD), jnp.float32).at[:, :F].set(w1)
    w5t = w5.reshape(-1, 1).astype(jnp.float32)      # (128, 1) for the VPU layer

    def col(b):                                      # bias as (out, 1) column
        return b.reshape(-1, 1).astype(EPI_DT)

    flat = [x_t,
            w1p.astype(MXU_DT), col(b1),
            w2.astype(MXU_DT), col(b2),
            w3.astype(MXU_DT), col(b3),
            w4.astype(MXU_DT), col(b4),
            w5t, b5.reshape(1, 1).astype(jnp.float32)]

    def resident(a):   # same block index every grid step -> stays VMEM-resident
        return pl.BlockSpec(a.shape, lambda i: (0, 0))

    in_specs = [pl.BlockSpec((F_PAD, tb), lambda i: (0, i))]
    in_specs += [resident(a) for a in flat[1:]]

    out_t = pl.pallas_call(
        mlp_kernel,
        out_shape=jax.ShapeDtypeStruct((1, b_pad), jnp.float32),
        grid=(nb,),
        in_specs=in_specs,
        out_specs=pl.BlockSpec((1, tb), lambda i: (0, i)),
        compiler_params=pltpu.CompilerParams(
            dimension_semantics=("parallel",),       # v7x: split tiles over 2 TCs
            vmem_limit_bytes=VMEM_LIMIT_BYTES),
    )(*flat)

    return out_t[0, :B].reshape(B, 1)


def init_params(key, num_features):
    """PyTorch nn.Linear default init: W (out, in), U[-1/sqrt(fan_in), +]."""
    dims = [(num_features, 128), (128, 256), (256, 256), (256, 128), (128, 1)]
    params = []
    for fan_in, fan_out in dims:
        key, kw, kb = jax.random.split(key, 3)
        bound = 1.0 / jnp.sqrt(float(fan_in))
        w = jax.random.uniform(kw, (fan_out, fan_in), jnp.float32, -bound, bound)
        b = jax.random.uniform(kb, (fan_out,), jnp.float32, -bound, bound)
        params.append((w, b))
    return params


def reference_forward(x, params):
    """Pure-JAX reference mirroring the kernel's precision choices
    (bf16 MXU operands + f32 accumulate, EPI_DT epilogue, f32 final layer)."""
    h = jnp.asarray(x, jnp.float32)
    for w, b in params[:-1]:
        y = jnp.dot(h.astype(MXU_DT), w.T.astype(MXU_DT),
                    preferred_element_type=jnp.float32)
        y = y.astype(EPI_DT) + b.astype(EPI_DT)
        h = jnp.maximum(y, 0.0).astype(MXU_DT)
    w5, b5 = params[-1]
    return jnp.dot(h.astype(jnp.float32), w5.T,
                   preferred_element_type=jnp.float32) + b5


if __name__ == "__main__":
    key = jax.random.PRNGKey(0)
    key, kx1, kx2 = jax.random.split(key, 3)
    params = init_params(key, NUM_FEATURES)

    # Small-batch / latency path: single grid step, batch padded to 128 lanes.
    x_small = jax.random.normal(kx1, (8, NUM_FEATURES), jnp.float32)
    out_small = jax.block_until_ready(simple_mlp_forward(x_small, params))
    ref_small = reference_forward(x_small, params)
    assert out_small.shape == (8, 1), out_small.shape
    assert jnp.allclose(out_small, ref_small, atol=2e-2, rtol=2e-2), (
        out_small, ref_small)

    # Larger batch: default TILE_B path (single or dual tile depending on chip).
    x_big = jax.random.normal(kx2, (1000, NUM_FEATURES), jnp.float32)
    out_big = jax.block_until_ready(simple_mlp_forward(x_big, params))
    ref_big = reference_forward(x_big, params)
    assert out_big.shape == (1000, 1), out_big.shape
    assert jnp.allclose(out_big, ref_big, atol=2e-2, rtol=2e-2)

    # Force the multi-tile grid path (resident weights across several steps).
    out_tiled = jax.block_until_ready(
        simple_mlp_forward(x_big, params, tile_b=256))
    assert out_tiled.shape == (1000, 1), out_tiled.shape
    assert jnp.allclose(out_tiled, ref_big, atol=2e-2, rtol=2e-2)

    print("KERNEL_OK")
</pallas_src>

<mosaic_0001>
module attributes {stable_mosaic.version = 11 : i64} {
  func.func @mlp_kernel(%arg0: i32, %arg1: memref<8x128xf32, #tpu.memory_space<vmem>>, %arg2: memref<128x8xbf16, #tpu.memory_space<vmem>>, %arg3: memref<128x1xbf16, #tpu.memory_space<vmem>>, %arg4: memref<256x128xbf16, #tpu.memory_space<vmem>>, %arg5: memref<256x1xbf16, #tpu.memory_space<vmem>>, %arg6: memref<256x256xbf16, #tpu.memory_space<vmem>>, %arg7: memref<256x1xbf16, #tpu.memory_space<vmem>>, %arg8: memref<128x256xbf16, #tpu.memory_space<vmem>>, %arg9: memref<128x1xbf16, #tpu.memory_space<vmem>>, %arg10: memref<128x1xf32, #tpu.memory_space<vmem>>, %arg11: memref<1x1xf32, #tpu.memory_space<vmem>>, %arg12: memref<1x128xf32, #tpu.memory_space<vmem>>) attributes {dimension_semantics = [#tpu.dimension_semantics<parallel>], iteration_bounds = array<i64: 1>, scalar_prefetch = 0 : i64, scratch_operands = 0 : i64, tpu.core_type = #tpu.core_type<tc>, window_params = [{transform_indices = @transform_0, window_bounds = array<i64: 8, 128>}, {pipeline_mode = #tpu.pipeline_mode<synchronous>, transform_indices = @transform_1, window_bounds = array<i64: 128, 8>}, {pipeline_mode = #tpu.pipeline_mode<synchronous>, transform_indices = @transform_2, window_bounds = array<i64: 128, 1>}, {pipeline_mode = #tpu.pipeline_mode<synchronous>, transform_indices = @transform_3, window_bounds = array<i64: 256, 128>}, {pipeline_mode = #tpu.pipeline_mode<synchronous>, transform_indices = @transform_4, window_bounds = array<i64: 256, 1>}, {pipeline_mode = #tpu.pipeline_mode<synchronous>, transform_indices = @transform_5, window_bounds = array<i64: 256, 256>}, {pipeline_mode = #tpu.pipeline_mode<synchronous>, transform_indices = @transform_6, window_bounds = array<i64: 256, 1>}, {pipeline_mode = #tpu.pipeline_mode<synchronous>, transform_indices = @transform_7, window_bounds = array<i64: 128, 256>}, {pipeline_mode = #tpu.pipeline_mode<synchronous>, transform_indices = @transform_8, window_bounds = array<i64: 128, 1>}, {pipeline_mode = #tpu.pipeline_mode<synchronous>, transform_indices = @transform_9, window_bounds = array<i64: 128, 1>}, {pipeline_mode = #tpu.pipeline_mode<synchronous>, transform_indices = @transform_10, window_bounds = array<i64: 1, 1>}, {transform_indices = @transform_11, window_bounds = array<i64: 1, 128>}]} {
    %c0 = arith.constant 0 : index
    %c0_0 = arith.constant 0 : index
    %0 = vector.load %arg1[%c0, %c0_0] : memref<8x128xf32, #tpu.memory_space<vmem>>, vector<8x128xf32>
    %1 = arith.truncf %0 : vector<8x128xf32> to vector<8x128xbf16>
    %c0_1 = arith.constant 0 : index
    %c0_2 = arith.constant 0 : index
    %2 = vector.load %arg2[%c0_1, %c0_2] : memref<128x8xbf16, #tpu.memory_space<vmem>>, vector<128x8xbf16>
    %cst = arith.constant dense<0.000000e+00> : vector<128x128xf32>
    %3 = tpu.matmul %2, %1, %cst {dimension_numbers = #tpu.dot_dimension_numbers<[1], [0], [0], [1], [0, 0, 1, 1], [], []>} : vector<128x8xbf16>, vector<8x128xbf16>, vector<128x128xf32> -> vector<128x128xf32>
    %4 = arith.truncf %3 : vector<128x128xf32> to vector<128x128xbf16>
    %c0_3 = arith.constant 0 : index
    %c0_4 = arith.constant 0 : index
    %5 = vector.load %arg3[%c0_3, %c0_4] : memref<128x1xbf16, #tpu.memory_space<vmem>>, vector<128x1xbf16>
    %6 = vector.broadcast %5 : vector<128x1xbf16> to vector<128x128xbf16>
    %7 = arith.addf %4, %6 : vector<128x128xbf16>
    %cst_5 = arith.constant 0.000000e+00 : bf16
    %8 = vector.broadcast %cst_5 : bf16 to vector<128x128xbf16>
    %9 = arith.maximumf %7, %8 : vector<128x128xbf16>
    %c0_6 = arith.constant 0 : index
    %c0_7 = arith.constant 0 : index
    %10 = vector.load %arg4[%c0_6, %c0_7] : memref<256x128xbf16, #tpu.memory_space<vmem>>, vector<256x128xbf16>
    %cst_8 = arith.constant dense<0.000000e+00> : vector<256x128xf32>
    %11 = tpu.matmul %10, %9, %cst_8 {dimension_numbers = #tpu.dot_dimension_numbers<[1], [0], [0], [1], [0, 0, 1, 1], [], []>} : vector<256x128xbf16>, vector<128x128xbf16>, vector<256x128xf32> -> vector<256x128xf32>
    %12 = arith.truncf %11 : vector<256x128xf32> to vector<256x128xbf16>
    %c0_9 = arith.constant 0 : index
    %c0_10 = arith.constant 0 : index
    %13 = vector.load %arg5[%c0_9, %c0_10] : memref<256x1xbf16, #tpu.memory_space<vmem>>, vector<256x1xbf16>
    %14 = vector.broadcast %13 : vector<256x1xbf16> to vector<256x128xbf16>
    %15 = arith.addf %12, %14 : vector<256x128xbf16>
    %cst_11 = arith.constant 0.000000e+00 : bf16
    %16 = vector.broadcast %cst_11 : bf16 to vector<256x128xbf16>
    %17 = arith.maximumf %15, %16 : vector<256x128xbf16>
    %c0_12 = arith.constant 0 : index
    %c0_13 = arith.constant 0 : index
    %18 = vector.load %arg6[%c0_12, %c0_13] : memref<256x256xbf16, #tpu.memory_space<vmem>>, vector<256x256xbf16>
    %cst_14 = arith.constant dense<0.000000e+00> : vector<256x128xf32>
    %19 = tpu.matmul %18, %17, %cst_14 {dimension_numbers = #tpu.dot_dimension_numbers<[1], [0], [0], [1], [0, 0, 1, 1], [], []>} : vector<256x256xbf16>, vector<256x128xbf16>, vector<256x128xf32> -> vector<256x128xf32>
    %20 = arith.truncf %19 : vector<256x128xf32> to vector<256x128xbf16>
    %c0_15 = arith.constant 0 : index
    %c0_16 = arith.constant 0 : index
    %21 = vector.load %arg7[%c0_15, %c0_16] : memref<256x1xbf16, #tpu.memory_space<vmem>>, vector<256x1xbf16>
    %22 = vector.broadcast %21 : vector<256x1xbf16> to vector<256x128xbf16>
    %23 = arith.addf %20, %22 : vector<256x128xbf16>
    %cst_17 = arith.constant 0.000000e+00 : bf16
    %24 = vector.broadcast %cst_17 : bf16 to vector<256x128xbf16>
    %25 = arith.maximumf %23, %24 : vector<256x128xbf16>
    %c0_18 = arith.constant 0 : index
    %c0_19 = arith.constant 0 : index
    %26 = vector.load %arg8[%c0_18, %c0_19] : memref<128x256xbf16, #tpu.memory_space<vmem>>, vector<128x256xbf16>
    %cst_20 = arith.constant dense<0.000000e+00> : vector<128x128xf32>
    %27 = tpu.matmul %26, %25, %cst_20 {dimension_numbers = #tpu.dot_dimension_numbers<[1], [0], [0], [1], [0, 0, 1, 1], [], []>} : vector<128x256xbf16>, vector<256x128xbf16>, vector<128x128xf32> -> vector<128x128xf32>
    %28 = arith.truncf %27 : vector<128x128xf32> to vector<128x128xbf16>
    %c0_21 = arith.constant 0 : index
    %c0_22 = arith.constant 0 : index
    %29 = vector.load %arg9[%c0_21, %c0_22] : memref<128x1xbf16, #tpu.memory_space<vmem>>, vector<128x1xbf16>
    %30 = vector.broadcast %29 : vector<128x1xbf16> to vector<128x128xbf16>
    %31 = arith.addf %28, %30 : vector<128x128xbf16>
    %cst_23 = arith.constant 0.000000e+00 : bf16
    %32 = vector.broadcast %cst_23 : bf16 to vector<128x128xbf16>
    %33 = arith.maximumf %31, %32 : vector<128x128xbf16>
    %c0_24 = arith.constant 0 : index
    %c0_25 = arith.constant 0 : index
    %34 = vector.load %arg10[%c0_24, %c0_25] : memref<128x1xf32, #tpu.memory_space<vmem>>, vector<128x1xf32>
    %35 = arith.extf %33 : vector<128x128xbf16> to vector<128x128xf32>
    %36 = vector.broadcast %34 : vector<128x1xf32> to vector<128x128xf32>
    %37 = arith.mulf %36, %35 : vector<128x128xf32>
    %cst_26 = arith.constant dense<0.000000e+00> : vector<128xf32>
    %38 = vector.multi_reduction <add>, %37, %cst_26 [0] : vector<128x128xf32> to vector<128xf32>
    %39 = vector.shape_cast %38 : vector<128xf32> to vector<1x128xf32>
    %c0_27 = arith.constant 0 : index
    %c0_28 = arith.constant 0 : index
    %40 = vector.load %arg11[%c0_27, %c0_28] : memref<1x1xf32, #tpu.memory_space<vmem>>, vector<1x1xf32>
    %41 = vector.broadcast %40 : vector<1x1xf32> to vector<1x128xf32>
    %42 = arith.addf %39, %41 : vector<1x128xf32>
    %c0_29 = arith.constant 0 : index
    %c0_30 = arith.constant 0 : index
    %43 = vector.load %arg12[%c0_29, %c0_30] : memref<1x128xf32, #tpu.memory_space<vmem>>, vector<1x128xf32>
    tpu.vector_store %arg12[%c0_29, %c0_30], %42 {strides = array<i32>} : memref<1x128xf32, #tpu.memory_space<vmem>>, vector<1x128xf32>,
    return
  }
  func.func @transform_0(%arg0: i32) -> (i32, i32) {
    %c0_i32 = arith.constant 0 : i32
    %c0_i32_0 = arith.constant 0 : i32
    return %c0_i32, %arg0 : i32, i32
  }
  func.func @transform_1(%arg0: i32) -> (i32, i32) {
    %c0_i32 = arith.constant 0 : i32
    %c0_i32_0 = arith.constant 0 : i32
    %c0_i32_1 = arith.constant 0 : i32
    return %c0_i32, %c0_i32_0 : i32, i32
  }
  func.func @transform_2(%arg0: i32) -> (i32, i32) {
    %c0_i32 = arith.constant 0 : i32
    %c0_i32_0 = arith.constant 0 : i32
    %c0_i32_1 = arith.constant 0 : i32
    return %c0_i32, %c0_i32_0 : i32, i32
  }
  func.func @transform_3(%arg0: i32) -> (i32, i32) {
    %c0_i32 = arith.constant 0 : i32
    %c0_i32_0 = arith.constant 0 : i32
    %c0_i32_1 = arith.constant 0 : i32
    return %c0_i32, %c0_i32_0 : i32, i32
  }
  func.func @transform_4(%arg0: i32) -> (i32, i32) {
    %c0_i32 = arith.constant 0 : i32
    %c0_i32_0 = arith.constant 0 : i32
    %c0_i32_1 = arith.constant 0 : i32
    return %c0_i32, %c0_i32_0 : i32, i32
  }
  func.func @transform_5(%arg0: i32) -> (i32, i32) {
    %c0_i32 = arith.constant 0 : i32
    %c0_i32_0 = arith.constant 0 : i32
    %c0_i32_1 = arith.constant 0 : i32
    return %c0_i32, %c0_i32_0 : i32, i32
  }
  func.func @transform_6(%arg0: i32) -> (i32, i32) {
    %c0_i32 = arith.constant 0 : i32
    %c0_i32_0 = arith.constant 0 : i32
    %c0_i32_1 = arith.constant 0 : i32
    return %c0_i32, %c0_i32_0 : i32, i32
  }
  func.func @transform_7(%arg0: i32) -> (i32, i32) {
    %c0_i32 = arith.constant 0 : i32
    %c0_i32_0 = arith.constant 0 : i32
    %c0_i32_1 = arith.constant 0 : i32
    return %c0_i32, %c0_i32_0 : i32, i32
  }
  func.func @transform_8(%arg0: i32) -> (i32, i32) {
    %c0_i32 = arith.constant 0 : i32
    %c0_i32_0 = arith.constant 0 : i32
    %c0_i32_1 = arith.constant 0 : i32
    return %c0_i32, %c0_i32_0 : i32, i32
  }
  func.func @transform_9(%arg0: i32) -> (i32, i32) {
    %c0_i32 = arith.constant 0 : i32
    %c0_i32_0 = arith.constant 0 : i32
    %c0_i32_1 = arith.constant 0 : i32
    return %c0_i32, %c0_i32_0 : i32, i32
  }
  func.func @transform_10(%arg0: i32) -> (i32, i32) {
    %c0_i32 = arith.constant 0 : i32
    %c0_i32_0 = arith.constant 0 : i32
    %c0_i32_1 = arith.constant 0 : i32
    return %c0_i32, %c0_i32_0 : i32, i32
  }
  func.func @transform_11(%arg0: i32) -> (i32, i32) {
    %c0_i32 = arith.constant 0 : i32
    %c0_i32_0 = arith.constant 0 : i32
    return %c0_i32, %arg0 : i32, i32
  }
}

</mosaic_0001>

<llo_original>
// kernel: simple_mlp_forward.1
$region0: #{simple_mlp_forward.1}
  #allocation0 [shape = 'u32[]', space=smem, size = 0x4, offset = 0x4, fixed_abs, tag = 'smem constant byte address 0x4 - core index']
  #allocation1 [shape = 'u32[144,128]{1,0:T(1,128)}', space=vmem, size = 0x12000, scoped, tag = 'internal scratch']
  #allocation2 [shape = 'f32[1,1]{1,0:T(1,128)S(1)}', space=vmem, size = 0x200, scoped, tag = 'scoped memory for simple_mlp_forward.1']
  %s0 = inlined_call_operand.hbm [shape: f32[8,128], index: 0, kind: input, shape index: {}]
  %s1 = inlined_call_operand.hbm [shape: bf16[128,8], index: 1, kind: input, shape index: {}]
  %s2 = inlined_call_operand.hbm [shape: bf16[128,1], index: 2, kind: input, shape index: {}]
  %s3 = inlined_call_operand.hbm [shape: bf16[256,128], index: 3, kind: input, shape index: {}]
  %s4 = inlined_call_operand.hbm [shape: bf16[256,1], index: 4, kind: input, shape index: {}]
  %s5 = inlined_call_operand.hbm [shape: bf16[256,256], index: 5, kind: input, shape index: {}]
  %s6 = inlined_call_operand.hbm [shape: bf16[256,1], index: 6, kind: input, shape index: {}]
  %s7 = inlined_call_operand.hbm [shape: bf16[128,256], index: 7, kind: input, shape index: {}]
  %s8 = inlined_call_operand.hbm [shape: bf16[128,1], index: 8, kind: input, shape index: {}]
  %s9 = inlined_call_operand.hbm [shape: f32[128,1], index: 9, kind: input, shape index: {}]
  %s10 = inlined_call_operand.<no memory space> [shape: f32[1,1], index: 10, kind: input, shape index: {}]
  %s11 = inlined_call_operand.hbm [shape: f32[1,128], index: 11, kind: output, shape index: {}]
  %s12 = sld [smem:[#allocation0]]
  $region94: #{simple_mlp_forward.1} parent=0
    _
  %s14 = ssub.s32 1, %s12
  %s15 = scalar_select 0, %s14, %s12
  %v16 = vstv %s10
  %17 = vst [vmem:[#allocation2] sm:$0x1] %v16
  $region1: #{simple_mlp_forward.1} parent=0
    #allocation3 [shape = 'u8[4096]{0}', space=vmem, size = 0x1000, scoped, tag = 'input window, operand 0, single buffered']
    #allocation4 [shape = 's32[1]{0}', space=sflag, size = 0x4, scoped, tag = 'scoped memory for simple_mlp_forward.1']
    #allocation5 [shape = 's32[1]{0}', space=sflag, size = 0x4, scoped, tag = 'scoped memory for simple_mlp_forward.1']
    #allocation6 [shape = 'u8[32768]{0}', space=vmem, size = 0x8000, scoped, tag = 'input window, operand 1, single buffered']
    #allocation7 [shape = 's32[1]{0}', space=sflag, size = 0x4, scoped, tag = 'scoped memory for simple_mlp_forward.1']
    #allocation8 [shape = 'u8[32768]{0}', space=vmem, size = 0x8000, scoped, tag = 'input window, operand 2, single buffered']
    #allocation9 [shape = 'u8[65536]{0}', space=vmem, size = 0x10000, scoped, tag = 'input window, operand 3, single buffered']
    #allocation10 [shape = 's32[1]{0}', space=sflag, size = 0x4, scoped, tag = 'scoped memory for simple_mlp_forward.1']
    #allocation11 [shape = 'u8[65536]{0}', space=vmem, size = 0x10000, scoped, tag = 'input window, operand 4, single buffered']
    #allocation12 [shape = 'u8[131072]{0}', space=vmem, size = 0x20000, scoped, tag = 'input window, operand 5, single buffered']
    #allocation13 [shape = 's32[1]{0}', space=sflag, size = 0x4, scoped, tag = 'scoped memory for simple_mlp_forward.1']
    #allocation14 [shape = 'u8[65536]{0}', space=vmem, size = 0x10000, scoped, tag = 'input window, operand 6, single buffered']
    #allocation15 [shape = 'u8[65536]{0}', space=vmem, size = 0x10000, scoped, tag = 'input window, operand 7, single buffered']
    #allocation16 [shape = 's32[1]{0}', space=sflag, size = 0x4, scoped, tag = 'scoped memory for simple_mlp_forward.1']
    #allocation17 [shape = 'u8[32768]{0}', space=vmem, size = 0x8000, scoped, tag = 'input window, operand 8, single buffered']
    #allocation18 [shape = 'u8[65536]{0}', space=vmem, size = 0x10000, scoped, tag = 'input window, operand 9, single buffered']
    #allocation19 [shape = 's32[1]{0}', space=sflag, size = 0x4, scoped, tag = 'scoped memory for simple_mlp_forward.1']
    #allocation20 [shape = 'u8[512]{0}', space=vmem, size = 0x400, scoped, tag = 'output window, operand 0, single buffered']
    %18 = vsyncpa [#allocation4], 0
    %19 = vsyncpa [#allocation7], 0
    %20 = vsyncpa [#allocation10], 0
    %21 = vsyncpa [#allocation13], 0
    %22 = vsyncpa [#allocation16], 0
    %23 = vsyncpa [#allocation19], 0
    %24 = vsyncpa [#allocation5], 0
    // Predicated region
    $region2: #{simple_mlp_forward.1} parent=1 // pred_check
      _
    $region3: #{simple_mlp_forward.1} parent=1 // pred_check_branch
      %26 = sbr.rel (0) target = $region5
    $region4: #{simple_mlp_forward.1} parent=1 // pred_region
      %s28 = ssub.s32 128, 128
      %29 = vsyncadd [#allocation4], %s28
      %s31 = sshll.u32 [#allocation3], 4
      %s32 = int_to_ptr.vmem [resolvable:$true] %s31
      %34 = dma.hbm_to_vmem [thread:$0]  %s0, 128, %s32, [#allocation4]
    $region5: #{simple_mlp_forward.1} parent=1 // pred_fallthru
      _
    // Predicated region
    $region6: #{simple_mlp_forward.1} parent=1 // pred_check
      _
    $region7: #{simple_mlp_forward.1} parent=1 // pred_check_branch
      %36 = sbr.rel (0) target = $region9
    $region8: #{simple_mlp_forward.1} parent=1 // pred_region
      %s38 = ssub.s32 1024, 1024
      %39 = vsyncadd [#allocation7], %s38
      %s40 = sshll.u32 [#allocation6], 4
      %s41 = int_to_ptr.vmem [resolvable:$true] %s40
      %46 = dma.hbm_to_vmem [thread:$0]  %s1, 1024, %s41, [#allocation7], 64, 64, 4
    $region9: #{simple_mlp_forward.1} parent=1 // pred_fallthru
      _
    // Predicated region
    $region10: #{simple_mlp_forward.1} parent=1 // pred_check
      _
    $region11: #{simple_mlp_forward.1} parent=1 // pred_check_branch
      %48 = sbr.rel (0) target = $region13
    $region12: #{simple_mlp_forward.1} parent=1 // pred_region
      %s50 = ssub.s32 1024, 1024
      %51 = vsyncadd [#allocation7], %s50
      %s52 = sshll.u32 [#allocation8], 4
      %s53 = int_to_ptr.vmem [resolvable:$true] %s52
      %58 = dma.hbm_to_vmem [thread:$0]  %s2, 1024, %s53, [#allocation7], 64, 64, 4
    $region13: #{simple_mlp_forward.1} parent=1 // pred_fallthru
      _
    // Predicated region
    $region14: #{simple_mlp_forward.1} parent=1 // pred_check
      _
    $region15: #{simple_mlp_forward.1} parent=1 // pred_check_branch
      %60 = sbr.rel (0) target = $region17
    $region16: #{simple_mlp_forward.1} parent=1 // pred_region
      %s62 = ssub.s32 2048, 2048
      %63 = vsyncadd [#allocation10], %s62
      %s64 = sshll.u32 [#allocation9], 4
      %s65 = int_to_ptr.vmem [resolvable:$true] %s64
      %70 = dma.hbm_to_vmem [thread:$0]  %s3, 2048, %s65, [#allocation10], 64, 64, 4
    $region17: #{simple_mlp_forward.1} parent=1 // pred_fallthru
      _
    // Predicated region
    $region18: #{simple_mlp_forward.1} parent=1 // pred_check
      _
    $region19: #{simple_mlp_forward.1} parent=1 // pred_check_branch
      %72 = sbr.rel (0) target = $region21
    $region20: #{simple_mlp_forward.1} parent=1 // pred_region
      %s74 = ssub.s32 2048, 2048
      %75 = vsyncadd [#allocation10], %s74
      %s76 = sshll.u32 [#allocation11], 4
      %s77 = int_to_ptr.vmem [resolvable:$true] %s76
      %82 = dma.hbm_to_vmem [thread:$0]  %s4, 2048, %s77, [#allocation10], 64, 64, 4
    $region21: #{simple_mlp_forward.1} parent=1 // pred_fallthru
      _
    // Predicated region
    $region22: #{simple_mlp_forward.1} parent=1 // pred_check
      _
    $region23: #{simple_mlp_forward.1} parent=1 // pred_check_branch
      %84 = sbr.rel (0) target = $region25
    $region24: #{simple_mlp_forward.1} parent=1 // pred_region
      %s86 = ssub.s32 4096, 4096
      %87 = vsyncadd [#allocation13], %s86
      %s88 = sshll.u32 [#allocation12], 4
      %s89 = int_to_ptr.vmem [resolvable:$true] %s88
      %94 = dma.hbm_to_vmem [thread:$0]  %s5, 4096, %s89, [#allocation13], 128, 128, 8
    $region25: #{simple_mlp_forward.1} parent=1 // pred_fallthru
      _
    // Predicated region
    $region26: #{simple_mlp_forward.1} parent=1 // pred_check
      _
    $region27: #{simple_mlp_forward.1} parent=1 // pred_check_branch
      %96 = sbr.rel (0) target = $region29
    $region28: #{simple_mlp_forward.1} parent=1 // pred_region
      %s98 = ssub.s32 2048, 2048
      %99 = vsyncadd [#allocation13], %s98
      %s100 = sshll.u32 [#allocation14], 4
      %s101 = int_to_ptr.vmem [resolvable:$true] %s100
      %106 = dma.hbm_to_vmem [thread:$0]  %s6, 2048, %s101, [#allocation13], 64, 64, 4
    $region29: #{simple_mlp_forward.1} parent=1 // pred_fallthru
      _
    // Predicated region
    $region30: #{simple_mlp_forward.1} parent=1 // pred_check
      _
    $region31: #{simple_mlp_forward.1} parent=1 // pred_check_branch
      %108 = sbr.rel (0) target = $region33
    $region32: #{simple_mlp_forward.1} parent=1 // pred_region
      %s110 = ssub.s32 2048, 2048
      %111 = vsyncadd [#allocation16], %s110
      %s112 = sshll.u32 [#allocation15], 4
      %s113 = int_to_ptr.vmem [resolvable:$true] %s112
      %118 = dma.hbm_to_vmem [thread:$0]  %s7, 2048, %s113, [#allocation16], 128, 128, 8
    $region33: #{simple_mlp_forward.1} parent=1 // pred_fallthru
      _
    // Predicated region
    $region34: #{simple_mlp_forward.1} parent=1 // pred_check
      _
    $region35: #{simple_mlp_forward.1} parent=1 // pred_check_branch
      %120 = sbr.rel (0) target = $region37
    $region36: #{simple_mlp_forward.1} parent=1 // pred_region
      %s122 = ssub.s32 1024, 1024
      %123 = vsyncadd [#allocation16], %s122
      %s124 = sshll.u32 [#allocation17], 4
      %s125 = int_to_ptr.vmem [resolvable:$true] %s124
      %130 = dma.hbm_to_vmem [thread:$0]  %s8, 1024, %s125, [#allocation16], 64, 64, 4
    $region37: #{simple_mlp_forward.1} parent=1 // pred_fallthru
      _
    // Predicated region
    $region38: #{simple_mlp_forward.1} parent=1 // pred_check
      _
    $region39: #{simple_mlp_forward.1} parent=1 // pred_check_branch
      %132 = sbr.rel (0) target = $region41
    $region40: #{simple_mlp_forward.1} parent=1 // pred_region
      %s134 = ssub.s32 2048, 2048
      %135 = vsyncadd [#allocation19], %s134
      %s136 = sshll.u32 [#allocation18], 4
      %s137 = int_to_ptr.vmem [resolvable:$true] %s136
      %142 = dma.hbm_to_vmem [thread:$0]  %s9, 2048, %s137, [#allocation19], 128, 128, 8
    $region41: #{simple_mlp_forward.1} parent=1 // pred_fallthru
      _
    // Predicated region
    $region42: #{simple_mlp_forward.1} parent=1 // pred_check
      _
    $region43: #{simple_mlp_forward.1} parent=1 // pred_check_branch
      %144 = sbr.rel (0) target = $region45
    $region44: #{simple_mlp_forward.1} parent=1 // pred_region
      _
    $region45: #{simple_mlp_forward.1} parent=1 // pred_fallthru
      _
    // Predicated region
    $region46: #{simple_mlp_forward.1} parent=1 // pred_check
      _
    $region47: #{simple_mlp_forward.1} parent=1 // pred_check_branch
      %146 = sbr.rel (0) target = $region49
    $region48: #{simple_mlp_forward.1} parent=1 // pred_region
      %147 = dma.done [#allocation4], 128
    $region49: #{simple_mlp_forward.1} parent=1 // pred_fallthru
      _
    // Predicated region
    $region50: #{simple_mlp_forward.1} parent=1 // pred_check
      _
    $region51: #{simple_mlp_forward.1} parent=1 // pred_check_branch
      %149 = sbr.rel (0) target = $region53
    $region52: #{simple_mlp_forward.1} parent=1 // pred_region
      %150 = dma.done [#allocation7], 1024
    $region53: #{simple_mlp_forward.1} parent=1 // pred_fallthru
      _
    // Predicated region
    $region54: #{simple_mlp_forward.1} parent=1 // pred_check
      _
    $region55: #{simple_mlp_forward.1} parent=1 // pred_check_branch
      %152 = sbr.rel (0) target = $region57
    $region56: #{simple_mlp_forward.1} parent=1 // pred_region
      %153 = dma.done [#allocation7], 1024
    $region57: #{simple_mlp_forward.1} parent=1 // pred_fallthru
      _
    // Predicated region
    $region58: #{simple_mlp_forward.1} parent=1 // pred_check
      _
    $region59: #{simple_mlp_forward.1} parent=1 // pred_check_branch
      %155 = sbr.rel (0) target = $region61
    $region60: #{simple_mlp_forward.1} parent=1 // pred_region
      %156 = dma.done [#allocation10], 2048
    $region61: #{simple_mlp_forward.1} parent=1 // pred_fallthru
      _
    // Predicated region
    $region62: #{simple_mlp_forward.1} parent=1 // pred_check
      _
    $region63: #{simple_mlp_forward.1} parent=1 // pred_check_branch
      %158 = sbr.rel (0) target = $region65
    $region64: #{simple_mlp_forward.1} parent=1 // pred_region
      %159 = dma.done [#allocation10], 2048
    $region65: #{simple_mlp_forward.1} parent=1 // pred_fallthru
      _
    // Predicated region
    $region66: #{simple_mlp_forward.1} parent=1 // pred_check
      _
    $region67: #{simple_mlp_forward.1} parent=1 // pred_check_branch
      %161 = sbr.rel (0) target = $region69
    $region68: #{simple_mlp_forward.1} parent=1 // pred_region
      %162 = dma.done [#allocation13], 4096
    $region69: #{simple_mlp_forward.1} parent=1 // pred_fallthru
      _
    // Predicated region
    $region70: #{simple_mlp_forward.1} parent=1 // pred_check
      _
    $region71: #{simple_mlp_forward.1} parent=1 // pred_check_branch
      %164 = sbr.rel (0) target = $region73
    $region72: #{simple_mlp_forward.1} parent=1 // pred_region
      %165 = dma.done [#allocation13], 2048
    $region73: #{simple_mlp_forward.1} parent=1 // pred_fallthru
      _
    // Predicated region
    $region74: #{simple_mlp_forward.1} parent=1 // pred_check
      _
    $region75: #{simple_mlp_forward.1} parent=1 // pred_check_branch
      %167 = sbr.rel (0) target = $region77
    $region76: #{simple_mlp_forward.1} parent=1 // pred_region
      %168 = dma.done [#allocation16], 2048
    $region77: #{simple_mlp_forward.1} parent=1 // pred_fallthru
      _
    // Predicated region
    $region78: #{simple_mlp_forward.1} parent=1 // pred_check
      _
    $region79: #{simple_mlp_forward.1} parent=1 // pred_check_branch
      %170 = sbr.rel (0) target = $region81
    $region80: #{simple_mlp_forward.1} parent=1 // pred_region
      %171 = dma.done [#allocation16], 1024
    $region81: #{simple_mlp_forward.1} parent=1 // pred_fallthru
      _
    // Predicated region
    $region82: #{simple_mlp_forward.1} parent=1 // pred_check
      _
    $region83: #{simple_mlp_forward.1} parent=1 // pred_check_branch
      %173 = sbr.rel (0) target = $region85
    $region84: #{simple_mlp_forward.1} parent=1 // pred_region
      %174 = dma.done [#allocation19], 2048
    $region85: #{simple_mlp_forward.1} parent=1 // pred_fallthru
      _
    %v176 = vld [vmem:[#allocation3] sm:$0xff]
    %v177 = vpack.c.bf16 %v176, %v176
    %v178 = vld [vmem:[#allocation6] sm:$0xf]
    %v179 = vld [vmem:[#allocation6 + $0x4] sm:$0xf]
    %v180 = vld [vmem:[#allocation6 + $0x8] sm:$0xf]
    %v181 = vld [vmem:[#allocation6 + $0xc] sm:$0xf]
    %v182 = vld [vmem:[#allocation6 + $0x10] sm:$0xf]
    %v183 = vld [vmem:[#allocation6 + $0x14] sm:$0xf]
    %v184 = vld [vmem:[#allocation6 + $0x18] sm:$0xf]
    %v185 = vld [vmem:[#allocation6 + $0x1c] sm:$0xf]
    %v186 = vld [vmem:[#allocation6 + $0x20] sm:$0xf]
    %v187 = vld [vmem:[#allocation6 + $0x24] sm:$0xf]
    %v188 = vld [vmem:[#allocation6 + $0x28] sm:$0xf]
    %v189 = vld [vmem:[#allocation6 + $0x2c] sm:$0xf]
    %v190 = vld [vmem:[#allocation6 + $0x30] sm:$0xf]
    %v191 = vld [vmem:[#allocation6 + $0x34] sm:$0xf]
    %v192 = vld [vmem:[#allocation6 + $0x38] sm:$0xf]
    %v193 = vld [vmem:[#allocation6 + $0x3c] sm:$0xf]
    %v210 = vunpack.c.l.b16 %v178
    %v211 = vunpack.c.l.b16 %v179
    %v212 = vunpack.c.l.b16 %v180
    %v213 = vunpack.c.l.b16 %v181
    %v214 = vunpack.c.l.b16 %v182
    %v215 = vunpack.c.l.b16 %v183
    %v216 = vunpack.c.l.b16 %v184
    %v217 = vunpack.c.l.b16 %v185
    %v218 = vunpack.c.l.b16 %v186
    %v219 = vunpack.c.l.b16 %v187
    %v220 = vunpack.c.l.b16 %v188
    %v221 = vunpack.c.l.b16 %v189
    %v222 = vunpack.c.l.b16 %v190
    %v223 = vunpack.c.l.b16 %v191
    %v224 = vunpack.c.l.b16 %v192
    %v225 = vunpack.c.l.b16 %v193
    %v226 = vpack.c.b16 %v211, %v210
    %v227 = vpack.c.b16 %v213, %v212
    %v228 = vpack.c.b16 %v215, %v214
    %v229 = vpack.c.b16 %v217, %v216
    %v230 = vpack.c.b16 %v219, %v218
    %v231 = vpack.c.b16 %v221, %v220
    %v232 = vpack.c.b16 %v223, %v222
    %v233 = vpack.c.b16 %v225, %v224
    %vm234 = vcmask 64512
    %v236 = vsel %vm234, %v226, 0
    %v239 = vsel %vm234, %v227, 0
    %v242 = vsel %vm234, %v228, 0
    %v245 = vsel %vm234, %v229, 0
    %v248 = vsel %vm234, %v230, 0
    %v251 = vsel %vm234, %v231, 0
    %v254 = vsel %vm234, %v232, 0
    %v257 = vsel %vm234, %v233, 0
    %vm259 = vcmask 1043456
    %v261 = vsel %vm259, %v177, 0
    %263 = vmatprep.subr.bf16.mxu0 0
    %264 = vmatpush1.bf16.msra.mxu0 %v261
    %265 = vmatprep.subr.bf16.mxu0 0
    %266 = vmatpush1.bf16.msra.mxu0 0
    %267 = vmatprep.subr.bf16.mxu0 0
    %268 = vmatpush1.bf16.msra.mxu0 0
    %269 = vmatprep.subr.bf16.mxu0 0
    %270 = vmatpush1.bf16.msra.mxu0 0
    %271 = vmatprep.subr.bf16.mxu0 0
    %272 = vmatpush1.bf16.msra.mxu0 0
    %273 = vmatprep.subr.bf16.mxu0 0
    %274 = vmatpush1.bf16.msra.mxu0 0
    %275 = vmatprep.subr.bf16.mxu0 0
    %276 = vmatpush1.bf16.msra.mxu0 0
    %277 = vmatprep.subr.bf16.mxu0 0
    %278 = vmatpush1.bf16.msra.mxu0 0
    %279 = vmatprep.subr.bf16.mxu0 0
    %280 = vmatpush1.bf16.msra.mxu0 0
    %281 = vmatprep.subr.bf16.mxu0 0
    %282 = vmatpush1.bf16.msra.mxu0 0
    %283 = vmatprep.subr.bf16.mxu0 0
    %284 = vmatpush1.bf16.msra.mxu0 0
    %285 = vmatprep.subr.bf16.mxu0 0
    %286 = vmatpush1.bf16.msra.mxu0 0
    %287 = vmatprep.subr.bf16.mxu0 0
    %288 = vmatpush1.bf16.msra.mxu0 0
    %289 = vmatprep.subr.bf16.mxu0 0
    %290 = vmatpush1.bf16.msra.mxu0 0
    %291 = vmatprep.subr.bf16.mxu0 0
    %292 = vmatpush1.bf16.msra.mxu0 0
    %293 = vmatprep.subr.bf16.mxu0 0
    %294 = vmatpush1.bf16.msra.mxu0 0
    %295 = vmatprep.mubr.bf16.mxu0 0
    %296 = vmatmul.mubr.bf16.gmra.mrb[0].mxu0 %v236
    %v297 = vpop.f32.mrb[0].mxu0
    %v298 = vadd.f32 0.0, %v297
    %v299 = vpop.f32.mrb[0].mxu0
    %v300 = vpop.f32.mrb[0].mxu0
    %v301 = vadd.f32 0.0, %v300
    %v302 = vpop.f32.mrb[0].mxu0
    %303 = vmatprep.mubr.bf16.mxu0 0
    %304 = vmatmul.mubr.bf16.gmra.mrb[0].mxu0 %v239
    %v305 = vpop.f32.mrb[0].mxu0
    %v306 = vadd.f32 0.0, %v305
    %v307 = vpop.f32.mrb[0].mxu0
    %v308 = vpop.f32.mrb[0].mxu0
    %v309 = vadd.f32 0.0, %v308
    %v310 = vpop.f32.mrb[0].mxu0
    %311 = vmatprep.mubr.bf16.mxu0 0
    %312 = vmatmul.mubr.bf16.gmra.mrb[0].mxu0 %v242
    %v313 = vpop.f32.mrb[0].mxu0
    %v314 = vadd.f32 0.0, %v313
    %v315 = vpop.f32.mrb[0].mxu0
    %v316 = vpop.f32.mrb[0].mxu0
    %v317 = vadd.f32 0.0, %v316
    %v318 = vpop.f32.mrb[0].mxu0
    %319 = vmatprep.mubr.bf16.mxu0 0
    %320 = vmatmul.mubr.bf16.gmra.mrb[0].mxu0 %v245
    %v321 = vpop.f32.mrb[0].mxu0
    %v322 = vadd.f32 0.0, %v321
    %v323 = vpop.f32.mrb[0].mxu0
    %v324 = vpop.f32.mrb[0].mxu0
    %v325 = vadd.f32 0.0, %v324
    %v326 = vpop.f32.mrb[0].mxu0
    %327 = vmatprep.mubr.bf16.mxu0 0
    %328 = vmatmul.mubr.bf16.gmra.mrb[0].mxu0 %v248
    %v329 = vpop.f32.mrb[0].mxu0
    %v330 = vadd.f32 0.0, %v329
    %v331 = vpop.f32.mrb[0].mxu0
    %v332 = vpop.f32.mrb[0].mxu0
    %v333 = vadd.f32 0.0, %v332
    %v334 = vpop.f32.mrb[0].mxu0
    %335 = vmatprep.mubr.bf16.mxu0 0
    %336 = vmatmul.mubr.bf16.gmra.mrb[0].mxu0 %v251
    %v337 = vpop.f32.mrb[0].mxu0
    %v338 = vadd.f32 0.0, %v337
    %v339 = vpop.f32.mrb[0].mxu0
    %v340 = vpop.f32.mrb[0].mxu0
    %v341 = vadd.f32 0.0, %v340
    %v342 = vpop.f32.mrb[0].mxu0
    %343 = vmatprep.mubr.bf16.mxu0 0
    %344 = vmatmul.mubr.bf16.gmra.mrb[0].mxu0 %v254
    %v345 = vpop.f32.mrb[0].mxu0
    %v346 = vadd.f32 0.0, %v345
    %v347 = vpop.f32.mrb[0].mxu0
    %v348 = vpop.f32.mrb[0].mxu0
    %v349 = vadd.f32 0.0, %v348
    %v350 = vpop.f32.mrb[0].mxu0
    %351 = vmatprep.mubr.bf16.mxu0 0
    %352 = vmatmul.mubr.bf16.gmra.mrb[0].mxu0 %v257
    %v353 = vpop.f32.mrb[0].mxu0
    %v354 = vadd.f32 0.0, %v353
    %v355 = vpop.f32.mrb[0].mxu0
    %v356 = vpop.f32.mrb[0].mxu0
    %v357 = vadd.f32 0.0, %v356
    %v358 = vpop.f32.mrb[0].mxu0
    %359 = vdwg.mxu0
    %v360 = vpack.c.bf16 %v301, %v298
    %v361 = vpack.c.bf16 %v309, %v306
    %v362 = vpack.c.bf16 %v317, %v314
    %v363 = vpack.c.bf16 %v325, %v322
    %v364 = vpack.c.bf16 %v333, %v330
    %v365 = vpack.c.bf16 %v341, %v338
    %v366 = vpack.c.bf16 %v349, %v346
    %v367 = vpack.c.bf16 %v357, %v354
    %v368 = vld [vmem:[#allocation8] sm:$0xf]
    %v369 = vld [vmem:[#allocation8 + $0x4] sm:$0xf]
    %v370 = vld [vmem:[#allocation8 + $0x8] sm:$0xf]
    %v371 = vld [vmem:[#allocation8 + $0xc] sm:$0xf]
    %v372 = vld [vmem:[#allocation8 + $0x10] sm:$0xf]
    %v373 = vld [vmem:[#allocation8 + $0x14] sm:$0xf]
    %v374 = vld [vmem:[#allocation8 + $0x18] sm:$0xf]
    %v375 = vld [vmem:[#allocation8 + $0x1c] sm:$0xf]
    %v376 = vld [vmem:[#allocation8 + $0x20] sm:$0xf]
    %v377 = vld [vmem:[#allocation8 + $0x24] sm:$0xf]
    %v378 = vld [vmem:[#allocation8 + $0x28] sm:$0xf]
    %v379 = vld [vmem:[#allocation8 + $0x2c] sm:$0xf]
    %v380 = vld [vmem:[#allocation8 + $0x30] sm:$0xf]
    %v381 = vld [vmem:[#allocation8 + $0x34] sm:$0xf]
    %v382 = vld [vmem:[#allocation8 + $0x38] sm:$0xf]
    %v383 = vld [vmem:[#allocation8 + $0x3c] sm:$0xf]
    %385 = vset.pattern.permute.xlu0 0
    %386 = vperm.xlu0 %385, %v368
    %v387 = vpop.permute.xlu0 %386
    %v390 = vunpack.c.l.s4 839922192
    %v391 = vunpack.c.0.s8 %v390
    %v392 = vlaneseq
    %v393 = vshrl.u32 %v392, 7
    %v394 = vsub.s32 %v391, %v393
    %v395 = vrot.slane %v387, %v394
    %397 = vset.pattern.permute.xlu0 0
    %398 = vperm.xlu0 %397, %v369
    %v399 = vpop.permute.xlu0 %398
    %v402 = vunpack.c.l.s4 839922192
    %v403 = vunpack.c.0.s8 %v402
    %v404 = vlaneseq
    %v405 = vshrl.u32 %v404, 7
    %v406 = vsub.s32 %v403, %v405
    %v407 = vrot.slane %v399, %v406
    %409 = vset.pattern.permute.xlu0 0
    %410 = vperm.xlu0 %409, %v370
    %v411 = vpop.permute.xlu0 %410
    %v414 = vunpack.c.l.s4 839922192
    %v415 = vunpack.c.0.s8 %v414
    %v416 = vlaneseq
    %v417 = vshrl.u32 %v416, 7
    %v418 = vsub.s32 %v415, %v417
    %v419 = vrot.slane %v411, %v418
    %421 = vset.pattern.permute.xlu0 0
    %422 = vperm.xlu0 %421, %v371
    %v423 = vpop.permute.xlu0 %422
    %v426 = vunpack.c.l.s4 839922192
    %v427 = vunpack.c.0.s8 %v426
    %v428 = vlaneseq
    %v429 = vshrl.u32 %v428, 7
    %v430 = vsub.s32 %v427, %v429
    %v431 = vrot.slane %v423, %v430
    %433 = vset.pattern.permute.xlu0 0
    %434 = vperm.xlu0 %433, %v372
    %v435 = vpop.permute.xlu0 %434
    %v438 = vunpack.c.l.s4 839922192
    %v439 = vunpack.c.0.s8 %v438
    %v440 = vlaneseq
    %v441 = vshrl.u32 %v440, 7
    %v442 = vsub.s32 %v439, %v441
    %v443 = vrot.slane %v435, %v442
    %445 = vset.pattern.permute.xlu0 0
    %446 = vperm.xlu0 %445, %v373
    %v447 = vpop.permute.xlu0 %446
    %v450 = vunpack.c.l.s4 839922192
    %v451 = vunpack.c.0.s8 %v450
    %v452 = vlaneseq
    %v453 = vshrl.u32 %v452, 7
    %v454 = vsub.s32 %v451, %v453
    %v455 = vrot.slane %v447, %v454
    %457 = vset.pattern.permute.xlu0 0
    %458 = vperm.xlu0 %457, %v374
    %v459 = vpop.permute.xlu0 %458
    %v462 = vunpack.c.l.s4 839922192
    %v463 = vunpack.c.0.s8 %v462
    %v464 = vlaneseq
    %v465 = vshrl.u32 %v464, 7
    %v466 = vsub.s32 %v463, %v465
    %v467 = vrot.slane %v459, %v466
    %469 = vset.pattern.permute.xlu0 0
    %470 = vperm.xlu0 %469, %v375
    %v471 = vpop.permute.xlu0 %470
    %v474 = vunpack.c.l.s4 839922192
    %v475 = vunpack.c.0.s8 %v474
    %v476 = vlaneseq
    %v477 = vshrl.u32 %v476, 7
    %v478 = vsub.s32 %v475, %v477
    %v479 = vrot.slane %v471, %v478
    %481 = vset.pattern.permute.xlu0 0
    %482 = vperm.xlu0 %481, %v376
    %v483 = vpop.permute.xlu0 %482
    %v486 = vunpack.c.l.s4 839922192
    %v487 = vunpack.c.0.s8 %v486
    %v488 = vlaneseq
    %v489 = vshrl.u32 %v488, 7
    %v490 = vsub.s32 %v487, %v489
    %v491 = vrot.slane %v483, %v490
    %493 = vset.pattern.permute.xlu0 0
    %494 = vperm.xlu0 %493, %v377
    %v495 = vpop.permute.xlu0 %494
    %v498 = vunpack.c.l.s4 839922192
    %v499 = vunpack.c.0.s8 %v498
    %v500 = vlaneseq
    %v501 = vshrl.u32 %v500, 7
    %v502 = vsub.s32 %v499, %v501
    %v503 = vrot.slane %v495, %v502
    %505 = vset.pattern.permute.xlu0 0
    %506 = vperm.xlu0 %505, %v378
    %v507 = vpop.permute.xlu0 %506
    %v510 = vunpack.c.l.s4 839922192
    %v511 = vunpack.c.0.s8 %v510
    %v512 = vlaneseq
    %v513 = vshrl.u32 %v512, 7
    %v514 = vsub.s32 %v511, %v513
    %v515 = vrot.slane %v507, %v514
    %517 = vset.pattern.permute.xlu0 0
    %518 = vperm.xlu0 %517, %v379
    %v519 = vpop.permute.xlu0 %518
    %v522 = vunpack.c.l.s4 839922192
    %v523 = vunpack.c.0.s8 %v522
    %v524 = vlaneseq
    %v525 = vshrl.u32 %v524, 7
    %v526 = vsub.s32 %v523, %v525
    %v527 = vrot.slane %v519, %v526
    %529 = vset.pattern.permute.xlu0 0
    %530 = vperm.xlu0 %529, %v380
    %v531 = vpop.permute.xlu0 %530
    %v534 = vunpack.c.l.s4 839922192
    %v535 = vunpack.c.0.s8 %v534
    %v536 = vlaneseq
    %v537 = vshrl.u32 %v536, 7
    %v538 = vsub.s32 %v535, %v537
    %v539 = vrot.slane %v531, %v538
    %541 = vset.pattern.permute.xlu0 0
    %542 = vperm.xlu0 %541, %v381
    %v543 = vpop.permute.xlu0 %542
    %v546 = vunpack.c.l.s4 839922192
    %v547 = vunpack.c.0.s8 %v546
    %v548 = vlaneseq
    %v549 = vshrl.u32 %v548, 7
    %v550 = vsub.s32 %v547, %v549
    %v551 = vrot.slane %v543, %v550
    %553 = vset.pattern.permute.xlu0 0
    %554 = vperm.xlu0 %553, %v382
    %v555 = vpop.permute.xlu0 %554
    %v558 = vunpack.c.l.s4 839922192
    %v559 = vunpack.c.0.s8 %v558
    %v560 = vlaneseq
    %v561 = vshrl.u32 %v560, 7
    %v562 = vsub.s32 %v559, %v561
    %v563 = vrot.slane %v555, %v562
    %565 = vset.pattern.permute.xlu0 0
    %566 = vperm.xlu0 %565, %v383
    %v567 = vpop.permute.xlu0 %566
    %v570 = vunpack.c.l.s4 839922192
    %v571 = vunpack.c.0.s8 %v570
    %v572 = vlaneseq
    %v573 = vshrl.u32 %v572, 7
    %v574 = vsub.s32 %v571, %v573
    %v575 = vrot.slane %v567, %v574
    %v592 = vunpack.c.l.b16 %v395
    %v593 = vunpack.c.l.b16 %v407
    %v594 = vunpack.c.l.b16 %v419
    %v595 = vunpack.c.l.b16 %v431
    %v596 = vunpack.c.l.b16 %v443
    %v597 = vunpack.c.l.b16 %v455
    %v598 = vunpack.c.l.b16 %v467
    %v599 = vunpack.c.l.b16 %v479
    %v600 = vunpack.c.l.b16 %v491
    %v601 = vunpack.c.l.b16 %v503
    %v602 = vunpack.c.l.b16 %v515
    %v603 = vunpack.c.l.b16 %v527
    %v604 = vunpack.c.l.b16 %v539
    %v605 = vunpack.c.l.b16 %v551
    %v606 = vunpack.c.l.b16 %v563
    %v607 = vunpack.c.l.b16 %v575
    %v608 = vpack.c.b16 %v593, %v592
    %v609 = vpack.c.b16 %v595, %v594
    %v610 = vpack.c.b16 %v597, %v596
    %v611 = vpack.c.b16 %v599, %v598
    %v612 = vpack.c.b16 %v601, %v600
    %v613 = vpack.c.b16 %v603, %v602
    %v614 = vpack.c.b16 %v605, %v604
    %v615 = vpack.c.b16 %v607, %v606
    %v624 = vadd.bf16 %v360, %v608
    %v625 = vadd.bf16 %v361, %v609
    %v626 = vadd.bf16 %v362, %v610
    %v627 = vadd.bf16 %v363, %v611
    %v628 = vadd.bf16 %v364, %v612
    %v629 = vadd.bf16 %v365, %v613
    %v630 = vadd.bf16 %v366, %v614
    %v631 = vadd.bf16 %v367, %v615
    %v632 = vmax.bf16 %v624, 0
    %v633 = vmax.bf16 %v625, 0
    %v634 = vmax.bf16 %v626, 0
    %v635 = vmax.bf16 %v627, 0
    %v636 = vmax.bf16 %v628, 0
    %v637 = vmax.bf16 %v629, 0
    %v638 = vmax.bf16 %v630, 0
    %v639 = vmax.bf16 %v631, 0
    %v640 = vld [vmem:[#allocation9] sm:$0xf]
    %v641 = vld [vmem:[#allocation9 + $0x4] sm:$0xf]
    %v642 = vld [vmem:[#allocation9 + $0x8] sm:$0xf]
    %v643 = vld [vmem:[#allocation9 + $0xc] sm:$0xf]
    %v644 = vld [vmem:[#allocation9 + $0x10] sm:$0xf]
    %v645 = vld [vmem:[#allocation9 + $0x14] sm:$0xf]
    %v646 = vld [vmem:[#allocation9 + $0x18] sm:$0xf]
    %v647 = vld [vmem:[#allocation9 + $0x1c] sm:$0xf]
    %v648 = vld [vmem:[#allocation9 + $0x20] sm:$0xf]
    %v649 = vld [vmem:[#allocation9 + $0x24] sm:$0xf]
    %v650 = vld [vmem:[#allocation9 + $0x28] sm:$0xf]
    %v651 = vld [vmem:[#allocation9 + $0x2c] sm:$0xf]
    %v652 = vld [vmem:[#allocation9 + $0x30] sm:$0xf]
    %v653 = vld [vmem:[#allocation9 + $0x34] sm:$0xf]
    %v654 = vld [vmem:[#allocation9 + $0x38] sm:$0xf]
    %v655 = vld [vmem:[#allocation9 + $0x3c] sm:$0xf]
    %v656 = vld [vmem:[#allocation9 + $0x40] sm:$0xf]
    %v657 = vld [vmem:[#allocation9 + $0x44] sm:$0xf]
    %v658 = vld [vmem:[#allocation9 + $0x48] sm:$0xf]
    %v659 = vld [vmem:[#allocation9 + $0x4c] sm:$0xf]
    %v660 = vld [vmem:[#allocation9 + $0x50] sm:$0xf]
    %v661 = vld [vmem:[#allocation9 + $0x54] sm:$0xf]
    %v662 = vld [vmem:[#allocation9 + $0x58] sm:$0xf]
    %v663 = vld [vmem:[#allocation9 + $0x5c] sm:$0xf]
    %v664 = vld [vmem:[#allocation9 + $0x60] sm:$0xf]
    %v665 = vld [vmem:[#allocation9 + $0x64] sm:$0xf]
    %v666 = vld [vmem:[#allocation9 + $0x68] sm:$0xf]
    %v667 = vld [vmem:[#allocation9 + $0x6c] sm:$0xf]
    %v668 = vld [vmem:[#allocation9 + $0x70] sm:$0xf]
    %v669 = vld [vmem:[#allocation9 + $0x74] sm:$0xf]
    %v670 = vld [vmem:[#allocation9 + $0x78] sm:$0xf]
    %v671 = vld [vmem:[#allocation9 + $0x7c] sm:$0xf]
    %v704 = vunpack.c.l.b16 %v640
    %v705 = vunpack.c.l.b16 %v641
    %v706 = vunpack.c.l.b16 %v642
    %v707 = vunpack.c.l.b16 %v643
    %v708 = vunpack.c.l.b16 %v644
    %v709 = vunpack.c.l.b16 %v645
    %v710 = vunpack.c.l.b16 %v646
    %v711 = vunpack.c.l.b16 %v647
    %v712 = vunpack.c.l.b16 %v648
    %v713 = vunpack.c.l.b16 %v649
    %v714 = vunpack.c.l.b16 %v650
    %v715 = vunpack.c.l.b16 %v651
    %v716 = vunpack.c.l.b16 %v652
    %v717 = vunpack.c.l.b16 %v653
    %v718 = vunpack.c.l.b16 %v654
    %v719 = vunpack.c.l.b16 %v655
    %v720 = vunpack.c.l.b16 %v656
    %v721 = vunpack.c.l.b16 %v657
    %v722 = vunpack.c.l.b16 %v658
    %v723 = vunpack.c.l.b16 %v659
    %v724 = vunpack.c.l.b16 %v660
    %v725 = vunpack.c.l.b16 %v661
    %v726 = vunpack.c.l.b16 %v662
    %v727 = vunpack.c.l.b16 %v663
    %v728 = vunpack.c.l.b16 %v664
    %v729 = vunpack.c.l.b16 %v665
    %v730 = vunpack.c.l.b16 %v666
    %v731 = vunpack.c.l.b16 %v667
    %v732 = vunpack.c.l.b16 %v668
    %v733 = vunpack.c.l.b16 %v669
    %v734 = vunpack.c.l.b16 %v670
    %v735 = vunpack.c.l.b16 %v671
    %v736 = vpack.c.b16 %v705, %v704
    %v737 = vpack.c.b16 %v707, %v706
    %v738 = vpack.c.b16 %v709, %v708
    %v739 = vpack.c.b16 %v711, %v710
    %v740 = vpack.c.b16 %v713, %v712
    %v741 = vpack.c.b16 %v715, %v714
    %v742 = vpack.c.b16 %v717, %v716
    %v743 = vpack.c.b16 %v719, %v718
    %v744 = vpack.c.b16 %v721, %v720
    %v745 = vpack.c.b16 %v723, %v722
    %v746 = vpack.c.b16 %v725, %v724
    %v747 = vpack.c.b16 %v727, %v726
    %v748 = vpack.c.b16 %v729, %v728
    %v749 = vpack.c.b16 %v731, %v730
    %v750 = vpack.c.b16 %v733, %v732
    %v751 = vpack.c.b16 %v735, %v734
    %768 = vmatprep.subr.bf16.mxu0 0
    %769 = vmatpush1.bf16.msra.mxu0 %v632
    %770 = vmatprep.subr.bf16.mxu0 0
    %771 = vmatpush1.bf16.msra.mxu0 %v633
    %772 = vmatprep.subr.bf16.mxu0 0
    %773 = vmatpush1.bf16.msra.mxu0 %v634
    %774 = vmatprep.subr.bf16.mxu0 0
    %775 = vmatpush1.bf16.msra.mxu0 %v635
    %776 = vmatprep.subr.bf16.mxu0 0
    %777 = vmatpush1.bf16.msra.mxu0 %v636
    %778 = vmatprep.subr.bf16.mxu0 0
    %779 = vmatpush1.bf16.msra.mxu0 %v637
    %780 = vmatprep.subr.bf16.mxu0 0
    %781 = vmatpush1.bf16.msra.mxu0 %v638
    %782 = vmatprep.subr.bf16.mxu0 0
    %783 = vmatpush1.bf16.msra.mxu0 %v639
    %784 = vmatprep.subr.bf16.mxu0 0
    %785 = vmatpush1.bf16.msra.mxu0 0
    %786 = vmatprep.subr.bf16.mxu0 0
    %787 = vmatpush1.bf16.msra.mxu0 0
    %788 = vmatprep.subr.bf16.mxu0 0
    %789 = vmatpush1.bf16.msra.mxu0 0
    %790 = vmatprep.subr.bf16.mxu0 0
    %791 = vmatpush1.bf16.msra.mxu0 0
    %792 = vmatprep.subr.bf16.mxu0 0
    %793 = vmatpush1.bf16.msra.mxu0 0
    %794 = vmatprep.subr.bf16.mxu0 0
    %795 = vmatpush1.bf16.msra.mxu0 0
    %796 = vmatprep.subr.bf16.mxu0 0
    %797 = vmatpush1.bf16.msra.mxu0 0
    %798 = vmatprep.subr.bf16.mxu0 0
    %799 = vmatpush1.bf16.msra.mxu0 0
    %800 = vmatprep.mubr.bf16.mxu0 0
    %801 = vmatmul.mubr.bf16.gmra.mrb[0].mxu0 %v736
    %v802 = vpop.f32.mrb[0].mxu0
    %v803 = vadd.f32 0.0, %v802
    %v804 = vpop.f32.mrb[0].mxu0
    %v805 = vpop.f32.mrb[0].mxu0
    %v806 = vadd.f32 0.0, %v805
    %v807 = vpop.f32.mrb[0].mxu0
    %808 = vmatprep.mubr.bf16.mxu0 0
    %809 = vmatmul.mubr.bf16.gmra.mrb[0].mxu0 %v737
    %v810 = vpop.f32.mrb[0].mxu0
    %v811 = vadd.f32 0.0, %v810
    %v812 = vpop.f32.mrb[0].mxu0
    %v813 = vpop.f32.mrb[0].mxu0
    %v814 = vadd.f32 0.0, %v813
    %v815 = vpop.f32.mrb[0].mxu0
    %816 = vmatprep.mubr.bf16.mxu0 0
    %817 = vmatmul.mubr.bf16.gmra.mrb[0].mxu0 %v738
    %v818 = vpop.f32.mrb[0].mxu0
    %v819 = vadd.f32 0.0, %v818
    %v820 = vpop.f32.mrb[0].mxu0
    %v821 = vpop.f32.mrb[0].mxu0
    %v822 = vadd.f32 0.0, %v821
    %v823 = vpop.f32.mrb[0].mxu0
    %824 = vmatprep.mubr.bf16.mxu0 0
    %825 = vmatmul.mubr.bf16.gmra.mrb[0].mxu0 %v739
    %v826 = vpop.f32.mrb[0].mxu0
    %v827 = vadd.f32 0.0, %v826
    %v828 = vpop.f32.mrb[0].mxu0
    %v829 = vpop.f32.mrb[0].mxu0
    %v830 = vadd.f32 0.0, %v829
    %v831 = vpop.f32.mrb[0].mxu0
    %832 = vmatprep.mubr.bf16.mxu0 0
    %833 = vmatmul.mubr.bf16.gmra.mrb[0].mxu0 %v740
    %v834 = vpop.f32.mrb[0].mxu0
    %v835 = vadd.f32 0.0, %v834
    %v836 = vpop.f32.mrb[0].mxu0
    %v837 = vpop.f32.mrb[0].mxu0
    %v838 = vadd.f32 0.0, %v837
    %v839 = vpop.f32.mrb[0].mxu0
    %840 = vmatprep.mubr.bf16.mxu0 0
    %841 = vmatmul.mubr.bf16.gmra.mrb[0].mxu0 %v741
    %v842 = vpop.f32.mrb[0].mxu0
    %v843 = vadd.f32 0.0, %v842
    %v844 = vpop.f32.mrb[0].mxu0
    %v845 = vpop.f32.mrb[0].mxu0
    %v846 = vadd.f32 0.0, %v845
    %v847 = vpop.f32.mrb[0].mxu0
    %848 = vmatprep.mubr.bf16.mxu0 0
    %849 = vmatmul.mubr.bf16.gmra.mrb[0].mxu0 %v742
    %v850 = vpop.f32.mrb[0].mxu0
    %v851 = vadd.f32 0.0, %v850
    %v852 = vpop.f32.mrb[0].mxu0
    %v853 = vpop.f32.mrb[0].mxu0
    %v854 = vadd.f32 0.0, %v853
    %v855 = vpop.f32.mrb[0].mxu0
    %856 = vmatprep.mubr.bf16.mxu0 0
    %857 = vmatmul.mubr.bf16.gmra.mrb[0].mxu0 %v743
    %v858 = vpop.f32.mrb[0].mxu0
    %v859 = vadd.f32 0.0, %v858
    %v860 = vpop.f32.mrb[0].mxu0
    %v861 = vpop.f32.mrb[0].mxu0
    %v862 = vadd.f32 0.0, %v861
    %v863 = vpop.f32.mrb[0].mxu0
    %864 = vmatprep.mubr.bf16.mxu0 0
    %865 = vmatmul.mubr.bf16.gmra.mrb[0].mxu0 %v744
    %v866 = vpop.f32.mrb[0].mxu0
    %v867 = vadd.f32 0.0, %v866
    %v868 = vpop.f32.mrb[0].mxu0
    %v869 = vpop.f32.mrb[0].mxu0
    %v870 = vadd.f32 0.0, %v869
    %v871 = vpop.f32.mrb[0].mxu0
    %872 = vmatprep.mubr.bf16.mxu0 0
    %873 = vmatmul.mubr.bf16.gmra.mrb[0].mxu0 %v745
    %v874 = vpop.f32.mrb[0].mxu0
    %v875 = vadd.f32 0.0, %v874
    %v876 = vpop.f32.mrb[0].mxu0
    %v877 = vpop.f32.mrb[0].mxu0
    %v878 = vadd.f32 0.0, %v877
    %v879 = vpop.f32.mrb[0].mxu0
    %880 = vmatprep.mubr.bf16.mxu0 0
    %881 = vmatmul.mubr.bf16.gmra.mrb[0].mxu0 %v746
    %v882 = vpop.f32.mrb[0].mxu0
    %v883 = vadd.f32 0.0, %v882
    %v884 = vpop.f32.mrb[0].mxu0
    %v885 = vpop.f32.mrb[0].mxu0
    %v886 = vadd.f32 0.0, %v885
    %v887 = vpop.f32.mrb[0].mxu0
    %888 = vmatprep.mubr.bf16.mxu0 0
    %889 = vmatmul.mubr.bf16.gmra.mrb[0].mxu0 %v747
    %v890 = vpop.f32.mrb[0].mxu0
    %v891 = vadd.f32 0.0, %v890
    %v892 = vpop.f32.mrb[0].mxu0
    %v893 = vpop.f32.mrb[0].mxu0
    %v894 = vadd.f32 0.0, %v893
    %v895 = vpop.f32.mrb[0].mxu0
    %896 = vmatprep.mubr.bf16.mxu0 0
    %897 = vmatmul.mubr.bf16.gmra.mrb[0].mxu0 %v748
    %v898 = vpop.f32.mrb[0].mxu0
    %v899 = vadd.f32 0.0, %v898
    %v900 = vpop.f32.mrb[0].mxu0
    %v901 = vpop.f32.mrb[0].mxu0
    %v902 = vadd.f32 0.0, %v901
    %v903 = vpop.f32.mrb[0].mxu0
    %904 = vmatprep.mubr.bf16.mxu0 0
    %905 = vmatmul.mubr.bf16.gmra.mrb[0].mxu0 %v749
    %v906 = vpop.f32.mrb[0].mxu0
    %v907 = vadd.f32 0.0, %v906
    %v908 = vpop.f32.mrb[0].mxu0
    %v909 = vpop.f32.mrb[0].mxu0
    %v910 = vadd.f32 0.0, %v909
    %v911 = vpop.f32.mrb[0].mxu0
    %912 = vmatprep.mubr.bf16.mxu0 0
    %913 = vmatmul.mubr.bf16.gmra.mrb[0].mxu0 %v750
    %v914 = vpop.f32.mrb[0].mxu0
    %v915 = vadd.f32 0.0, %v914
    %v916 = vpop.f32.mrb[0].mxu0
    %v917 = vpop.f32.mrb[0].mxu0
    %v918 = vadd.f32 0.0, %v917
    %v919 = vpop.f32.mrb[0].mxu0
    %920 = vmatprep.mubr.bf16.mxu0 0
    %921 = vmatmul.mubr.bf16.gmra.mrb[0].mxu0 %v751
    %v922 = vpop.f32.mrb[0].mxu0
    %v923 = vadd.f32 0.0, %v922
    %v924 = vpop.f32.mrb[0].mxu0
    %v925 = vpop.f32.mrb[0].mxu0
    %v926 = vadd.f32 0.0, %v925
    %v927 = vpop.f32.mrb[0].mxu0
    %928 = vdwg.mxu0
    %v929 = vpack.c.bf16 %v806, %v803
    %v930 = vpack.c.bf16 %v814, %v811
    %v931 = vpack.c.bf16 %v822, %v819
    %v932 = vpack.c.bf16 %v830, %v827
    %v933 = vpack.c.bf16 %v838, %v835
    %v934 = vpack.c.bf16 %v846, %v843
    %v935 = vpack.c.bf16 %v854, %v851
    %v936 = vpack.c.bf16 %v862, %v859
    %v937 = vpack.c.bf16 %v870, %v867
    %v938 = vpack.c.bf16 %v878, %v875
    %v939 = vpack.c.bf16 %v886, %v883
    %v940 = vpack.c.bf16 %v894, %v891
    %v941 = vpack.c.bf16 %v902, %v899
    %v942 = vpack.c.bf16 %v910, %v907
    %v943 = vpack.c.bf16 %v918, %v915
    %v944 = vpack.c.bf16 %v926, %v923
    %v945 = vld [vmem:[#allocation11] sm:$0xf]
    %v946 = vld [vmem:[#allocation11 + $0x4] sm:$0xf]
    %v947 = vld [vmem:[#allocation11 + $0x8] sm:$0xf]
    %v948 = vld [vmem:[#allocation11 + $0xc] sm:$0xf]
    %v949 = vld [vmem:[#allocation11 + $0x10] sm:$0xf]
    %v950 = vld [vmem:[#allocation11 + $0x14] sm:$0xf]
    %v951 = vld [vmem:[#allocation11 + $0x18] sm:$0xf]
    %v952 = vld [vmem:[#allocation11 + $0x1c] sm:$0xf]
    %v953 = vld [vmem:[#allocation11 + $0x20] sm:$0xf]
    %v954 = vld [vmem:[#allocation11 + $0x24] sm:$0xf]
    %v955 = vld [vmem:[#allocation11 + $0x28] sm:$0xf]
    %v956 = vld [vmem:[#allocation11 + $0x2c] sm:$0xf]
    %v957 = vld [vmem:[#allocation11 + $0x30] sm:$0xf]
    %v958 = vld [vmem:[#allocation11 + $0x34] sm:$0xf]
    %v959 = vld [vmem:[#allocation11 + $0x38] sm:$0xf]
    %v960 = vld [vmem:[#allocation11 + $0x3c] sm:$0xf]
    %v961 = vld [vmem:[#allocation11 + $0x40] sm:$0xf]
    %v962 = vld [vmem:[#allocation11 + $0x44] sm:$0xf]
    %v963 = vld [vmem:[#allocation11 + $0x48] sm:$0xf]
    %v964 = vld [vmem:[#allocation11 + $0x4c] sm:$0xf]
    %v965 = vld [vmem:[#allocation11 + $0x50] sm:$0xf]
    %v966 = vld [vmem:[#allocation11 + $0x54] sm:$0xf]
    %v967 = vld [vmem:[#allocation11 + $0x58] sm:$0xf]
    %v968 = vld [vmem:[#allocation11 + $0x5c] sm:$0xf]
    %v969 = vld [vmem:[#allocation11 + $0x60] sm:$0xf]
    %v970 = vld [vmem:[#allocation11 + $0x64] sm:$0xf]
    %v971 = vld [vmem:[#allocation11 + $0x68] sm:$0xf]
    %v972 = vld [vmem:[#allocation11 + $0x6c] sm:$0xf]
    %v973 = vld [vmem:[#allocation11 + $0x70] sm:$0xf]
    %v974 = vld [vmem:[#allocation11 + $0x74] sm:$0xf]
    %v975 = vld [vmem:[#allocation11 + $0x78] sm:$0xf]
    %v976 = vld [vmem:[#allocation11 + $0x7c] sm:$0xf]
    %978 = vset.pattern.permute.xlu0 0
    %979 = vperm.xlu0 %978, %v945
    %v980 = vpop.permute.xlu0 %979
    %v983 = vunpack.c.l.s4 839922192
    %v984 = vunpack.c.0.s8 %v983
    %v985 = vlaneseq
    %v986 = vshrl.u32 %v985, 7
    %v987 = vsub.s32 %v984, %v986
    %v988 = vrot.slane %v980, %v987
    %990 = vset.pattern.permute.xlu0 0
    %991 = vperm.xlu0 %990, %v946
    %v992 = vpop.permute.xlu0 %991
    %v995 = vunpack.c.l.s4 839922192
    %v996 = vunpack.c.0.s8 %v995
    %v997 = vlaneseq
    %v998 = vshrl.u32 %v997, 7
    %v999 = vsub.s32 %v996, %v998
    %v1000 = vrot.slane %v992, %v999
    %1002 = vset.pattern.permute.xlu0 0
    %1003 = vperm.xlu0 %1002, %v947
    %v1004 = vpop.permute.xlu0 %1003
    %v1007 = vunpack.c.l.s4 839922192
    %v1008 = vunpack.c.0.s8 %v1007
    %v1009 = vlaneseq
    %v1010 = vshrl.u32 %v1009, 7
    %v1011 = vsub.s32 %v1008, %v1010
    %v1012 = vrot.slane %v1004, %v1011
    %1014 = vset.pattern.permute.xlu0 0
    %1015 = vperm.xlu0 %1014, %v948
    %v1016 = vpop.permute.xlu0 %1015
    %v1019 = vunpack.c.l.s4 839922192
    %v1020 = vunpack.c.0.s8 %v1019
    %v1021 = vlaneseq
    %v1022 = vshrl.u32 %v1021, 7
    %v1023 = vsub.s32 %v1020, %v1022
    %v1024 = vrot.slane %v1016, %v1023
    %1026 = vset.pattern.permute.xlu0 0
    %1027 = vperm.xlu0 %1026, %v949
    %v1028 = vpop.permute.xlu0 %1027
    %v1031 = vunpack.c.l.s4 839922192
    %v1032 = vunpack.c.0.s8 %v1031
    %v1033 = vlaneseq
    %v1034 = vshrl.u32 %v1033, 7
    %v1035 = vsub.s32 %v1032, %v1034
    %v1036 = vrot.slane %v1028, %v1035
    %1038 = vset.pattern.permute.xlu0 0
    %1039 = vperm.xlu0 %1038, %v950
    %v1040 = vpop.permute.xlu0 %1039
    %v1043 = vunpack.c.l.s4 839922192
    %v1044 = vunpack.c.0.s8 %v1043
    %v1045 = vlaneseq
    %v1046 = vshrl.u32 %v1045, 7
    %v1047 = vsub.s32 %v1044, %v1046
    %v1048 = vrot.slane %v1040, %v1047
    %1050 = vset.pattern.permute.xlu0 0
    %1051 = vperm.xlu0 %1050, %v951
    %v1052 = vpop.permute.xlu0 %1051
    %v1055 = vunpack.c.l.s4 839922192
    %v1056 = vunpack.c.0.s8 %v1055
    %v1057 = vlaneseq
    %v1058 = vshrl.u32 %v1057, 7
    %v1059 = vsub.s32 %v1056, %v1058
    %v1060 = vrot.slane %v1052, %v1059
    %1062 = vset.pattern.permute.xlu0 0
    %1063 = vperm.xlu0 %1062, %v952
    %v1064 = vpop.permute.xlu0 %1063
    %v1067 = vunpack.c.l.s4 839922192
    %v1068 = vunpack.c.0.s8 %v1067
    %v1069 = vlaneseq
    %v1070 = vshrl.u32 %v1069, 7
    %v1071 = vsub.s32 %v1068, %v1070
    %v1072 = vrot.slane %v1064, %v1071
    %1074 = vset.pattern.permute.xlu0 0
    %1075 = vperm.xlu0 %1074, %v953
    %v1076 = vpop.permute.xlu0 %1075
    %v1079 = vunpack.c.l.s4 839922192
    %v1080 = vunpack.c.0.s8 %v1079
    %v1081 = vlaneseq
    %v1082 = vshrl.u32 %v1081, 7
    %v1083 = vsub.s32 %v1080, %v1082
    %v1084 = vrot.slane %v1076, %v1083
    %1086 = vset.pattern.permute.xlu0 0
    %1087 = vperm.xlu0 %1086, %v954
    %v1088 = vpop.permute.xlu0 %1087
    %v1091 = vunpack.c.l.s4 839922192
    %v1092 = vunpack.c.0.s8 %v1091
    %v1093 = vlaneseq
    %v1094 = vshrl.u32 %v1093, 7
    %v1095 = vsub.s32 %v1092, %v1094
    %v1096 = vrot.slane %v1088, %v1095
    %1098 = vset.pattern.permute.xlu0 0
    %1099 = vperm.xlu0 %1098, %v955
    %v1100 = vpop.permute.xlu0 %1099
    %v1103 = vunpack.c.l.s4 839922192
    %v1104 = vunpack.c.0.s8 %v1103
    %v1105 = vlaneseq
    %v1106 = vshrl.u32 %v1105, 7
    %v1107 = vsub.s32 %v1104, %v1106
    %v1108 = vrot.slane %v1100, %v1107
    %1110 = vset.pattern.permute.xlu0 0
    %1111 = vperm.xlu0 %1110, %v956
    %v1112 = vpop.permute.xlu0 %1111
    %v1115 = vunpack.c.l.s4 839922192
    %v1116 = vunpack.c.0.s8 %v1115
    %v1117 = vlaneseq
    %v1118 = vshrl.u32 %v1117, 7
    %v1119 = vsub.s32 %v1116, %v1118
    %v1120 = vrot.slane %v1112, %v1119
    %1122 = vset.pattern.permute.xlu0 0
    %1123 = vperm.xlu0 %1122, %v957
    %v1124 = vpop.permute.xlu0 %1123
    %v1127 = vunpack.c.l.s4 839922192
    %v1128 = vunpack.c.0.s8 %v1127
    %v1129 = vlaneseq
    %v1130 = vshrl.u32 %v1129, 7
    %v1131 = vsub.s32 %v1128, %v1130
    %v1132 = vrot.slane %v1124, %v1131
    %1134 = vset.pattern.permute.xlu0 0
    %1135 = vperm.xlu0 %1134, %v958
    %v1136 = vpop.permute.xlu0 %1135
    %v1139 = vunpack.c.l.s4 839922192
    %v1140 = vunpack.c.0.s8 %v1139
    %v1141 = vlaneseq
    %v1142 = vshrl.u32 %v1141, 7
    %v1143 = vsub.s32 %v1140, %v1142
    %v1144 = vrot.slane %v1136, %v1143
    %1146 = vset.pattern.permute.xlu0 0
    %1147 = vperm.xlu0 %1146, %v959
    %v1148 = vpop.permute.xlu0 %1147
    %v1151 = vunpack.c.l.s4 839922192
    %v1152 = vunpack.c.0.s8 %v1151
    %v1153 = vlaneseq
    %v1154 = vshrl.u32 %v1153, 7
    %v1155 = vsub.s32 %v1152, %v1154
    %v1156 = vrot.slane %v1148, %v1155
    %1158 = vset.pattern.permute.xlu0 0
    %1159 = vperm.xlu0 %1158, %v960
    %v1160 = vpop.permute.xlu0 %1159
    %v1163 = vunpack.c.l.s4 839922192
    %v1164 = vunpack.c.0.s8 %v1163
    %v1165 = vlaneseq
    %v1166 = vshrl.u32 %v1165, 7
    %v1167 = vsub.s32 %v1164, %v1166
    %v1168 = vrot.slane %v1160, %v1167
    %1170 = vset.pattern.permute.xlu0 0
    %1171 = vperm.xlu0 %1170, %v961
    %v1172 = vpop.permute.xlu0 %1171
    %v1175 = vunpack.c.l.s4 839922192
    %v1176 = vunpack.c.0.s8 %v1175
    %v1177 = vlaneseq
    %v1178 = vshrl.u32 %v1177, 7
    %v1179 = vsub.s32 %v1176, %v1178
    %v1180 = vrot.slane %v1172, %v1179
    %1182 = vset.pattern.permute.xlu0 0
    %1183 = vperm.xlu0 %1182, %v962
    %v1184 = vpop.permute.xlu0 %1183
    %v1187 = vunpack.c.l.s4 839922192
    %v1188 = vunpack.c.0.s8 %v1187
    %v1189 = vlaneseq
    %v1190 = vshrl.u32 %v1189, 7
    %v1191 = vsub.s32 %v1188, %v1190
    %v1192 = vrot.slane %v1184, %v1191
    %1194 = vset.pattern.permute.xlu0 0
    %1195 = vperm.xlu0 %1194, %v963
    %v1196 = vpop.permute.xlu0 %1195
    %v1199 = vunpack.c.l.s4 839922192
    %v1200 = vunpack.c.0.s8 %v1199
    %v1201 = vlaneseq
    %v1202 = vshrl.u32 %v1201, 7
    %v1203 = vsub.s32 %v1200, %v1202
    %v1204 = vrot.slane %v1196, %v1203
    %1206 = vset.pattern.permute.xlu0 0
    %1207 = vperm.xlu0 %1206, %v964
    %v1208 = vpop.permute.xlu0 %1207
    %v1211 = vunpack.c.l.s4 839922192
    %v1212 = vunpack.c.0.s8 %v1211
    %v1213 = vlaneseq
    %v1214 = vshrl.u32 %v1213, 7
    %v1215 = vsub.s32 %v1212, %v1214
    %v1216 = vrot.slane %v1208, %v1215
    %1218 = vset.pattern.permute.xlu0 0
    %1219 = vperm.xlu0 %1218, %v965
    %v1220 = vpop.permute.xlu0 %1219
    %v1223 = vunpack.c.l.s4 839922192
    %v1224 = vunpack.c.0.s8 %v1223
    %v1225 = vlaneseq
    %v1226 = vshrl.u32 %v1225, 7
    %v1227 = vsub.s32 %v1224, %v1226
    %v1228 = vrot.slane %v1220, %v1227
    %1230 = vset.pattern.permute.xlu0 0
    %1231 = vperm.xlu0 %1230, %v966
    %v1232 = vpop.permute.xlu0 %1231
    %v1235 = vunpack.c.l.s4 839922192
    %v1236 = vunpack.c.0.s8 %v1235
    %v1237 = vlaneseq
    %v1238 = vshrl.u32 %v1237, 7
    %v1239 = vsub.s32 %v1236, %v1238
    %v1240 = vrot.slane %v1232, %v1239
    %1242 = vset.pattern.permute.xlu0 0
    %1243 = vperm.xlu0 %1242, %v967
    %v1244 = vpop.permute.xlu0 %1243
    %v1247 = vunpack.c.l.s4 839922192
    %v1248 = vunpack.c.0.s8 %v1247
    %v1249 = vlaneseq
    %v1250 = vshrl.u32 %v1249, 7
    %v1251 = vsub.s32 %v1248, %v1250
    %v1252 = vrot.slane %v1244, %v1251
    %1254 = vset.pattern.permute.xlu0 0
    %1255 = vperm.xlu0 %1254, %v968
    %v1256 = vpop.permute.xlu0 %1255
    %v1259 = vunpack.c.l.s4 839922192
    %v1260 = vunpack.c.0.s8 %v1259
    %v1261 = vlaneseq
    %v1262 = vshrl.u32 %v1261, 7
    %v1263 = vsub.s32 %v1260, %v1262
    %v1264 = vrot.slane %v1256, %v1263
    %1266 = vset.pattern.permute.xlu0 0
    %1267 = vperm.xlu0 %1266, %v969
    %v1268 = vpop.permute.xlu0 %1267
    %v1271 = vunpack.c.l.s4 839922192
    %v1272 = vunpack.c.0.s8 %v1271
    %v1273 = vlaneseq
    %v1274 = vshrl.u32 %v1273, 7
    %v1275 = vsub.s32 %v1272, %v1274
    %v1276 = vrot.slane %v1268, %v1275
    %1278 = vset.pattern.permute.xlu0 0
    %1279 = vperm.xlu0 %1278, %v970
    %v1280 = vpop.permute.xlu0 %1279
    %v1283 = vunpack.c.l.s4 839922192
    %v1284 = vunpack.c.0.s8 %v1283
    %v1285 = vlaneseq
    %v1286 = vshrl.u32 %v1285, 7
    %v1287 = vsub.s32 %v1284, %v1286
    %v1288 = vrot.slane %v1280, %v1287
    %1290 = vset.pattern.permute.xlu0 0
    %1291 = vperm.xlu0 %1290, %v971
    %v1292 = vpop.permute.xlu0 %1291
    %v1295 = vunpack.c.l.s4 839922192
    %v1296 = vunpack.c.0.s8 %v1295
    %v1297 = vlaneseq
    %v1298 = vshrl.u32 %v1297, 7
    %v1299 = vsub.s32 %v1296, %v1298
    %v1300 = vrot.slane %v1292, %v1299
    %1302 = vset.pattern.permute.xlu0 0
    %1303 = vperm.xlu0 %1302, %v972
    %v1304 = vpop.permute.xlu0 %1303
    %v1307 = vunpack.c.l.s4 839922192
    %v1308 = vunpack.c.0.s8 %v1307
    %v1309 = vlaneseq
    %v1310 = vshrl.u32 %v1309, 7
    %v1311 = vsub.s32 %v1308, %v1310
    %v1312 = vrot.slane %v1304, %v1311
    %1314 = vset.pattern.permute.xlu0 0
    %1315 = vperm.xlu0 %1314, %v973
    %v1316 = vpop.permute.xlu0 %1315
    %v1319 = vunpack.c.l.s4 839922192
    %v1320 = vunpack.c.0.s8 %v1319
    %v1321 = vlaneseq
    %v1322 = vshrl.u32 %v1321, 7
    %v1323 = vsub.s32 %v1320, %v1322
    %v1324 = vrot.slane %v1316, %v1323
    %1326 = vset.pattern.permute.xlu0 0
    %1327 = vperm.xlu0 %1326, %v974
    %v1328 = vpop.permute.xlu0 %1327
    %v1331 = vunpack.c.l.s4 839922192
    %v1332 = vunpack.c.0.s8 %v1331
    %v1333 = vlaneseq
    %v1334 = vshrl.u32 %v1333, 7
    %v1335 = vsub.s32 %v1332, %v1334
    %v1336 = vrot.slane %v1328, %v1335
    %1338 = vset.pattern.permute.xlu0 0
    %1339 = vperm.xlu0 %1338, %v975
    %v1340 = vpop.permute.xlu0 %1339
    %v1343 = vunpack.c.l.s4 839922192
    %v1344 = vunpack.c.0.s8 %v1343
    %v1345 = vlaneseq
    %v1346 = vshrl.u32 %v1345, 7
    %v1347 = vsub.s32 %v1344, %v1346
    %v1348 = vrot.slane %v1340, %v1347
    %1350 = vset.pattern.permute.xlu0 0
    %1351 = vperm.xlu0 %1350, %v976
    %v1352 = vpop.permute.xlu0 %1351
    %v1355 = vunpack.c.l.s4 839922192
    %v1356 = vunpack.c.0.s8 %v1355
    %v1357 = vlaneseq
    %v1358 = vshrl.u32 %v1357, 7
    %v1359 = vsub.s32 %v1356, %v1358
    %v1360 = vrot.slane %v1352, %v1359
    %v1393 = vunpack.c.l.b16 %v988
    %v1394 = vunpack.c.l.b16 %v1000
    %v1395 = vunpack.c.l.b16 %v1012
    %v1396 = vunpack.c.l.b16 %v1024
    %v1397 = vunpack.c.l.b16 %v1036
    %v1398 = vunpack.c.l.b16 %v1048
    %v1399 = vunpack.c.l.b16 %v1060
    %v1400 = vunpack.c.l.b16 %v1072
    %v1401 = vunpack.c.l.b16 %v1084
    %v1402 = vunpack.c.l.b16 %v1096
    %v1403 = vunpack.c.l.b16 %v1108
    %v1404 = vunpack.c.l.b16 %v1120
    %v1405 = vunpack.c.l.b16 %v1132
    %v1406 = vunpack.c.l.b16 %v1144
    %v1407 = vunpack.c.l.b16 %v1156
    %v1408 = vunpack.c.l.b16 %v1168
    %v1409 = vunpack.c.l.b16 %v1180
    %v1410 = vunpack.c.l.b16 %v1192
    %v1411 = vunpack.c.l.b16 %v1204
    %v1412 = vunpack.c.l.b16 %v1216
    %v1413 = vunpack.c.l.b16 %v1228
    %v1414 = vunpack.c.l.b16 %v1240
    %v1415 = vunpack.c.l.b16 %v1252
    %v1416 = vunpack.c.l.b16 %v1264
    %v1417 = vunpack.c.l.b16 %v1276
    %v1418 = vunpack.c.l.b16 %v1288
    %v1419 = vunpack.c.l.b16 %v1300
    %v1420 = vunpack.c.l.b16 %v1312
    %v1421 = vunpack.c.l.b16 %v1324
    %v1422 = vunpack.c.l.b16 %v1336
    %v1423 = vunpack.c.l.b16 %v1348
    %v1424 = vunpack.c.l.b16 %v1360
    %v1425 = vpack.c.b16 %v1394, %v1393
    %v1426 = vpack.c.b16 %v1396, %v1395
    %v1427 = vpack.c.b16 %v1398, %v1397
    %v1428 = vpack.c.b16 %v1400, %v1399
    %v1429 = vpack.c.b16 %v1402, %v1401
    %v1430 = vpack.c.b16 %v1404, %v1403
    %v1431 = vpack.c.b16 %v1406, %v1405
    %v1432 = vpack.c.b16 %v1408, %v1407
    %v1433 = vpack.c.b16 %v1410, %v1409
    %v1434 = vpack.c.b16 %v1412, %v1411
    %v1435 = vpack.c.b16 %v1414, %v1413
    %v1436 = vpack.c.b16 %v1416, %v1415
    %v1437 = vpack.c.b16 %v1418, %v1417
    %v1438 = vpack.c.b16 %v1420, %v1419
    %v1439 = vpack.c.b16 %v1422, %v1421
    %v1440 = vpack.c.b16 %v1424, %v1423
    %v1457 = vadd.bf16 %v929, %v1425
    %v1458 = vadd.bf16 %v930, %v1426
    %v1459 = vadd.bf16 %v931, %v1427
    %v1460 = vadd.bf16 %v932, %v1428
    %v1461 = vadd.bf16 %v933, %v1429
    %v1462 = vadd.bf16 %v934, %v1430
    %v1463 = vadd.bf16 %v935, %v1431
    %v1464 = vadd.bf16 %v936, %v1432
    %v1465 = vadd.bf16 %v937, %v1433
    %v1466 = vadd.bf16 %v938, %v1434
    %v1467 = vadd.bf16 %v939, %v1435
    %v1468 = vadd.bf16 %v940, %v1436
    %v1469 = vadd.bf16 %v941, %v1437
    %v1470 = vadd.bf16 %v942, %v1438
    %v1471 = vadd.bf16 %v943, %v1439
    %v1472 = vadd.bf16 %v944, %v1440
    %v1473 = vmax.bf16 %v1457, 0
    %v1474 = vmax.bf16 %v1458, 0
    %v1475 = vmax.bf16 %v1459, 0
    %v1476 = vmax.bf16 %v1460, 0
    %v1477 = vmax.bf16 %v1461, 0
    %v1478 = vmax.bf16 %v1462, 0
    %v1479 = vmax.bf16 %v1463, 0
    %v1480 = vmax.bf16 %v1464, 0
    %v1481 = vmax.bf16 %v1465, 0
    %v1482 = vmax.bf16 %v1466, 0
    %v1483 = vmax.bf16 %v1467, 0
    %v1484 = vmax.bf16 %v1468, 0
    %v1485 = vmax.bf16 %v1469, 0
    %v1486 = vmax.bf16 %v1470, 0
    %v1487 = vmax.bf16 %v1471, 0
    %v1488 = vmax.bf16 %v1472, 0
    %v1489 = vld [vmem:[#allocation12] sm:$0xff]
    %v1490 = vld [vmem:[#allocation12 + $0x8] sm:$0xff]
    %v1491 = vld [vmem:[#allocation12 + $0x10] sm:$0xff]
    %v1492 = vld [vmem:[#allocation12 + $0x18] sm:$0xff]
    %v1493 = vld [vmem:[#allocation12 + $0x20] sm:$0xff]
    %v1494 = vld [vmem:[#allocation12 + $0x28] sm:$0xff]
    %v1495 = vld [vmem:[#allocation12 + $0x30] sm:$0xff]
    %v1496 = vld [vmem:[#allocation12 + $0x38] sm:$0xff]
    %v1497 = vld [vmem:[#allocation12 + $0x40] sm:$0xff]
    %v1498 = vld [vmem:[#allocation12 + $0x48] sm:$0xff]
    %v1499 = vld [vmem:[#allocation12 + $0x50] sm:$0xff]
    %v1500 = vld [vmem:[#allocation12 + $0x58] sm:$0xff]
    %v1501 = vld [vmem:[#allocation12 + $0x60] sm:$0xff]
    %v1502 = vld [vmem:[#allocation12 + $0x68] sm:$0xff]
    %v1503 = vld [vmem:[#allocation12 + $0x70] sm:$0xff]
    %v1504 = vld [vmem:[#allocation12 + $0x78] sm:$0xff]
    %v1505 = vld [vmem:[#allocation12 + $0x80] sm:$0xff]
    %v1506 = vld [vmem:[#allocation12 + $0x88] sm:$0xff]
    %v1507 = vld [vmem:[#allocation12 + $0x90] sm:$0xff]
    %v1508 = vld [vmem:[#allocation12 + $0x98] sm:$0xff]
    %v1509 = vld [vmem:[#allocation12 + $0xa0] sm:$0xff]
    %v1510 = vld [vmem:[#allocation12 + $0xa8] sm:$0xff]
    %v1511 = vld [vmem:[#allocation12 + $0xb0] sm:$0xff]
    %v1512 = vld [vmem:[#allocation12 + $0xb8] sm:$0xff]
    %v1513 = vld [vmem:[#allocation12 + $0xc0] sm:$0xff]
    %v1514 = vld [vmem:[#allocation12 + $0xc8] sm:$0xff]
    %v1515 = vld [vmem:[#allocation12 + $0xd0] sm:$0xff]
    %v1516 = vld [vmem:[#allocation12 + $0xd8] sm:$0xff]
    %v1517 = vld [vmem:[#allocation12 + $0xe0] sm:$0xff]
    %v1518 = vld [vmem:[#allocation12 + $0xe8] sm:$0xff]
    %v1519 = vld [vmem:[#allocation12 + $0xf0] sm:$0xff]
    %v1520 = vld [vmem:[#allocation12 + $0xf8] sm:$0xff]
    %v1553 = vunpack.c.l.b16 %v1489
    %v1554 = vunpack.c.h.b16 %v1489
    %v1555 = vunpack.c.l.b16 %v1490
    %v1556 = vunpack.c.h.b16 %v1490
    %v1557 = vunpack.c.l.b16 %v1491
    %v1558 = vunpack.c.h.b16 %v1491
    %v1559 = vunpack.c.l.b16 %v1492
    %v1560 = vunpack.c.h.b16 %v1492
    %v1561 = vunpack.c.l.b16 %v1493
    %v1562 = vunpack.c.h.b16 %v1493
    %v1563 = vunpack.c.l.b16 %v1494
    %v1564 = vunpack.c.h.b16 %v1494
    %v1565 = vunpack.c.l.b16 %v1495
    %v1566 = vunpack.c.h.b16 %v1495
    %v1567 = vunpack.c.l.b16 %v1496
    %v1568 = vunpack.c.h.b16 %v1496
    %v1569 = vunpack.c.l.b16 %v1497
    %v1570 = vunpack.c.h.b16 %v1497
    %v1571 = vunpack.c.l.b16 %v1498
    %v1572 = vunpack.c.h.b16 %v1498
    %v1573 = vunpack.c.l.b16 %v1499
    %v1574 = vunpack.c.h.b16 %v1499
    %v1575 = vunpack.c.l.b16 %v1500
    %v1576 = vunpack.c.h.b16 %v1500
    %v1577 = vunpack.c.l.b16 %v1501
    %v1578 = vunpack.c.h.b16 %v1501
    %v1579 = vunpack.c.l.b16 %v1502
    %v1580 = vunpack.c.h.b16 %v1502
    %v1581 = vunpack.c.l.b16 %v1503
    %v1582 = vunpack.c.h.b16 %v1503
    %v1583 = vunpack.c.l.b16 %v1504
    %v1584 = vunpack.c.h.b16 %v1504
    %v1585 = vunpack.c.l.b16 %v1505
    %v1586 = vunpack.c.h.b16 %v1505
    %v1587 = vunpack.c.l.b16 %v1506
    %v1588 = vunpack.c.h.b16 %v1506
    %v1589 = vunpack.c.l.b16 %v1507
    %v1590 = vunpack.c.h.b16 %v1507
    %v1591 = vunpack.c.l.b16 %v1508
    %v1592 = vunpack.c.h.b16 %v1508
    %v1593 = vunpack.c.l.b16 %v1509
    %v1594 = vunpack.c.h.b16 %v1509
    %v1595 = vunpack.c.l.b16 %v1510
    %v1596 = vunpack.c.h.b16 %v1510
    %v1597 = vunpack.c.l.b16 %v1511
    %v1598 = vunpack.c.h.b16 %v1511
    %v1599 = vunpack.c.l.b16 %v1512
    %v1600 = vunpack.c.h.b16 %v1512
    %v1601 = vunpack.c.l.b16 %v1513
    %v1602 = vunpack.c.h.b16 %v1513
    %v1603 = vunpack.c.l.b16 %v1514
    %v1604 = vunpack.c.h.b16 %v1514
    %v1605 = vunpack.c.l.b16 %v1515
    %v1606 = vunpack.c.h.b16 %v1515
    %v1607 = vunpack.c.l.b16 %v1516
    %v1608 = vunpack.c.h.b16 %v1516
    %v1609 = vunpack.c.l.b16 %v1517
    %v1610 = vunpack.c.h.b16 %v1517
    %v1611 = vunpack.c.l.b16 %v1518
    %v1612 = vunpack.c.h.b16 %v1518
    %v1613 = vunpack.c.l.b16 %v1519
    %v1614 = vunpack.c.h.b16 %v1519
    %v1615 = vunpack.c.l.b16 %v1520
    %v1616 = vunpack.c.h.b16 %v1520
    %v1617 = vpack.c.b16 %v1555, %v1553
    %v1618 = vpack.c.b16 %v1556, %v1554
    %v1619 = vpack.c.b16 %v1559, %v1557
    %v1620 = vpack.c.b16 %v1560, %v1558
    %v1621 = vpack.c.b16 %v1563, %v1561
    %v1622 = vpack.c.b16 %v1564, %v1562
    %v1623 = vpack.c.b16 %v1567, %v1565
    %v1624 = vpack.c.b16 %v1568, %v1566
    %v1625 = vpack.c.b16 %v1571, %v1569
    %v1626 = vpack.c.b16 %v1572, %v1570
    %v1627 = vpack.c.b16 %v1575, %v1573
    %v1628 = vpack.c.b16 %v1576, %v1574
    %v1629 = vpack.c.b16 %v1579, %v1577
    %v1630 = vpack.c.b16 %v1580, %v1578
    %v1631 = vpack.c.b16 %v1583, %v1581
    %v1632 = vpack.c.b16 %v1584, %v1582
    %v1633 = vpack.c.b16 %v1587, %v1585
    %v1634 = vpack.c.b16 %v1588, %v1586
    %v1635 = vpack.c.b16 %v1591, %v1589
    %v1636 = vpack.c.b16 %v1592, %v1590
    %v1637 = vpack.c.b16 %v1595, %v1593
    %v1638 = vpack.c.b16 %v1596, %v1594
    %v1639 = vpack.c.b16 %v1599, %v1597
    %v1640 = vpack.c.b16 %v1600, %v1598
    %v1641 = vpack.c.b16 %v1603, %v1601
    %v1642 = vpack.c.b16 %v1604, %v1602
    %v1643 = vpack.c.b16 %v1607, %v1605
    %v1644 = vpack.c.b16 %v1608, %v1606
    %v1645 = vpack.c.b16 %v1611, %v1609
    %v1646 = vpack.c.b16 %v1612, %v1610
    %v1647 = vpack.c.b16 %v1615, %v1613
    %v1648 = vpack.c.b16 %v1616, %v1614
    %1681 = vmatprep.subr.bf16.mxu0 0
    %1682 = vmatpush1.bf16.msra.mxu0 %v1473
    %1683 = vmatprep.subr.bf16.mxu0 0
    %1684 = vmatpush1.bf16.msra.mxu0 %v1474
    %1685 = vmatprep.subr.bf16.mxu0 0
    %1686 = vmatpush1.bf16.msra.mxu0 %v1475
    %1687 = vmatprep.subr.bf16.mxu0 0
    %1688 = vmatpush1.bf16.msra.mxu0 %v1476
    %1689 = vmatprep.subr.bf16.mxu0 0
    %1690 = vmatpush1.bf16.msra.mxu0 %v1477
    %1691 = vmatprep.subr.bf16.mxu0 0
    %1692 = vmatpush1.bf16.msra.mxu0 %v1478
    %1693 = vmatprep.subr.bf16.mxu0 0
    %1694 = vmatpush1.bf16.msra.mxu0 %v1479
    %1695 = vmatprep.subr.bf16.mxu0 0
    %1696 = vmatpush1.bf16.msra.mxu0 %v1480
    %1697 = vmatprep.subr.bf16.mxu0 0
    %1698 = vmatpush1.bf16.msra.mxu0 %v1481
    %1699 = vmatprep.subr.bf16.mxu0 0
    %1700 = vmatpush1.bf16.msra.mxu0 %v1482
    %1701 = vmatprep.subr.bf16.mxu0 0
    %1702 = vmatpush1.bf16.msra.mxu0 %v1483
    %1703 = vmatprep.subr.bf16.mxu0 0
    %1704 = vmatpush1.bf16.msra.mxu0 %v1484
    %1705 = vmatprep.subr.bf16.mxu0 0
    %1706 = vmatpush1.bf16.msra.mxu0 %v1485
    %1707 = vmatprep.subr.bf16.mxu0 0
    %1708 = vmatpush1.bf16.msra.mxu0 %v1486
    %1709 = vmatprep.subr.bf16.mxu0 0
    %1710 = vmatpush1.bf16.msra.mxu0 %v1487
    %1711 = vmatprep.subr.bf16.mxu0 0
    %1712 = vmatpush1.bf16.msra.mxu0 %v1488
    %1713 = vmatprep.mubr.bf16.mxu0 %v1618
    %1714 = vmatmul.mubr.bf16.gmra.mrb[0].mxu0 %v1617
    %v1715 = vpop.f32.mrb[0].mxu0
    %v1716 = vadd.f32 0.0, %v1715
    %v1717 = vpop.f32.mrb[0].mxu0
    %v1718 = vpop.f32.mrb[0].mxu0
    %v1719 = vadd.f32 0.0, %v1718
    %v1720 = vpop.f32.mrb[0].mxu0
    %1721 = vmatprep.mubr.bf16.mxu0 %v1620
    %1722 = vmatmul.mubr.bf16.gmra.mrb[0].mxu0 %v1619
    %v1723 = vpop.f32.mrb[0].mxu0
    %v1724 = vadd.f32 0.0, %v1723
    %v1725 = vpop.f32.mrb[0].mxu0
    %v1726 = vpop.f32.mrb[0].mxu0
    %v1727 = vadd.f32 0.0, %v1726
    %v1728 = vpop.f32.mrb[0].mxu0
    %1729 = vmatprep.mubr.bf16.mxu0 %v1622
    %1730 = vmatmul.mubr.bf16.gmra.mrb[0].mxu0 %v1621
    %v1731 = vpop.f32.mrb[0].mxu0
    %v1732 = vadd.f32 0.0, %v1731
    %v1733 = vpop.f32.mrb[0].mxu0
    %v1734 = vpop.f32.mrb[0].mxu0
    %v1735 = vadd.f32 0.0, %v1734
    %v1736 = vpop.f32.mrb[0].mxu0
    %1737 = vmatprep.mubr.bf16.mxu0 %v1624
    %1738 = vmatmul.mubr.bf16.gmra.mrb[0].mxu0 %v1623
    %v1739 = vpop.f32.mrb[0].mxu0
    %v1740 = vadd.f32 0.0, %v1739
    %v1741 = vpop.f32.mrb[0].mxu0
    %v1742 = vpop.f32.mrb[0].mxu0
    %v1743 = vadd.f32 0.0, %v1742
    %v1744 = vpop.f32.mrb[0].mxu0
    %1745 = vmatprep.mubr.bf16.mxu0 %v1626
    %1746 = vmatmul.mubr.bf16.gmra.mrb[0].mxu0 %v1625
    %v1747 = vpop.f32.mrb[0].mxu0
    %v1748 = vadd.f32 0.0, %v1747
    %v1749 = vpop.f32.mrb[0].mxu0
    %v1750 = vpop.f32.mrb[0].mxu0
    %v1751 = vadd.f32 0.0, %v1750
    %v1752 = vpop.f32.mrb[0].mxu0
    %1753 = vmatprep.mubr.bf16.mxu0 %v1628
    %1754 = vmatmul.mubr.bf16.gmra.mrb[0].mxu0 %v1627
    %v1755 = vpop.f32.mrb[0].mxu0
    %v1756 = vadd.f32 0.0, %v1755
    %v1757 = vpop.f32.mrb[0].mxu0
    %v1758 = vpop.f32.mrb[0].mxu0
    %v1759 = vadd.f32 0.0, %v1758
    %v1760 = vpop.f32.mrb[0].mxu0
    %1761 = vmatprep.mubr.bf16.mxu0 %v1630
    %1762 = vmatmul.mubr.bf16.gmra.mrb[0].mxu0 %v1629
    %v1763 = vpop.f32.mrb[0].mxu0
    %v1764 = vadd.f32 0.0, %v1763
    %v1765 = vpop.f32.mrb[0].mxu0
    %v1766 = vpop.f32.mrb[0].mxu0
    %v1767 = vadd.f32 0.0, %v1766
    %v1768 = vpop.f32.mrb[0].mxu0
    %1769 = vmatprep.mubr.bf16.mxu0 %v1632
    %1770 = vmatmul.mubr.bf16.gmra.mrb[0].mxu0 %v1631
    %v1771 = vpop.f32.mrb[0].mxu0
    %v1772 = vadd.f32 0.0, %v1771
    %v1773 = vpop.f32.mrb[0].mxu0
    %v1774 = vpop.f32.mrb[0].mxu0
    %v1775 = vadd.f32 0.0, %v1774
    %v1776 = vpop.f32.mrb[0].mxu0
    %1777 = vmatprep.mubr.bf16.mxu0 %v1634
    %1778 = vmatmul.mubr.bf16.gmra.mrb[0].mxu0 %v1633
    %v1779 = vpop.f32.mrb[0].mxu0
    %v1780 = vadd.f32 0.0, %v1779
    %v1781 = vpop.f32.mrb[0].mxu0
    %v1782 = vpop.f32.mrb[0].mxu0
    %v1783 = vadd.f32 0.0, %v1782
    %v1784 = vpop.f32.mrb[0].mxu0
    %1785 = vmatprep.mubr.bf16.mxu0 %v1636
    %1786 = vmatmul.mubr.bf16.gmra.mrb[0].mxu0 %v1635
    %v1787 = vpop.f32.mrb[0].mxu0
    %v1788 = vadd.f32 0.0, %v1787
    %v1789 = vpop.f32.mrb[0].mxu0
    %v1790 = vpop.f32.mrb[0].mxu0
    %v1791 = vadd.f32 0.0, %v1790
    %v1792 = vpop.f32.mrb[0].mxu0
    %1793 = vmatprep.mubr.bf16.mxu0 %v1638
    %1794 = vmatmul.mubr.bf16.gmra.mrb[0].mxu0 %v1637
    %v1795 = vpop.f32.mrb[0].mxu0
    %v1796 = vadd.f32 0.0, %v1795
    %v1797 = vpop.f32.mrb[0].mxu0
    %v1798 = vpop.f32.mrb[0].mxu0
    %v1799 = vadd.f32 0.0, %v1798
    %v1800 = vpop.f32.mrb[0].mxu0
    %1801 = vmatprep.mubr.bf16.mxu0 %v1640
    %1802 = vmatmul.mubr.bf16.gmra.mrb[0].mxu0 %v1639
    %v1803 = vpop.f32.mrb[0].mxu0
    %v1804 = vadd.f32 0.0, %v1803
    %v1805 = vpop.f32.mrb[0].mxu0
    %v1806 = vpop.f32.mrb[0].mxu0
    %v1807 = vadd.f32 0.0, %v1806
    %v1808 = vpop.f32.mrb[0].mxu0
    %1809 = vmatprep.mubr.bf16.mxu0 %v1642
    %1810 = vmatmul.mubr.bf16.gmra.mrb[0].mxu0 %v1641
    %v1811 = vpop.f32.mrb[0].mxu0
    %v1812 = vadd.f32 0.0, %v1811
    %v1813 = vpop.f32.mrb[0].mxu0
    %v1814 = vpop.f32.mrb[0].mxu0
    %v1815 = vadd.f32 0.0, %v1814
    %v1816 = vpop.f32.mrb[0].mxu0
    %1817 = vmatprep.mubr.bf16.mxu0 %v1644
    %1818 = vmatmul.mubr.bf16.gmra.mrb[0].mxu0 %v1643
    %v1819 = vpop.f32.mrb[0].mxu0
    %v1820 = vadd.f32 0.0, %v1819
    %v1821 = vpop.f32.mrb[0].mxu0
    %v1822 = vpop.f32.mrb[0].mxu0
    %v1823 = vadd.f32 0.0, %v1822
    %v1824 = vpop.f32.mrb[0].mxu0
    %1825 = vmatprep.mubr.bf16.mxu0 %v1646
    %1826 = vmatmul.mubr.bf16.gmra.mrb[0].mxu0 %v1645
    %v1827 = vpop.f32.mrb[0].mxu0
    %v1828 = vadd.f32 0.0, %v1827
    %v1829 = vpop.f32.mrb[0].mxu0
    %v1830 = vpop.f32.mrb[0].mxu0
    %v1831 = vadd.f32 0.0, %v1830
    %v1832 = vpop.f32.mrb[0].mxu0
    %1833 = vmatprep.mubr.bf16.mxu0 %v1648
    %1834 = vmatmul.mubr.bf16.gmra.mrb[0].mxu0 %v1647
    %v1835 = vpop.f32.mrb[0].mxu0
    %v1836 = vadd.f32 0.0, %v1835
    %v1837 = vpop.f32.mrb[0].mxu0
    %v1838 = vpop.f32.mrb[0].mxu0
    %v1839 = vadd.f32 0.0, %v1838
    %v1840 = vpop.f32.mrb[0].mxu0
    %1841 = vdwg.mxu0
    %v1842 = vpack.c.bf16 %v1719, %v1716
    %v1843 = vpack.c.bf16 %v1727, %v1724
    %v1844 = vpack.c.bf16 %v1735, %v1732
    %v1845 = vpack.c.bf16 %v1743, %v1740
    %v1846 = vpack.c.bf16 %v1751, %v1748
    %v1847 = vpack.c.bf16 %v1759, %v1756
    %v1848 = vpack.c.bf16 %v1767, %v1764
    %v1849 = vpack.c.bf16 %v1775, %v1772
    %v1850 = vpack.c.bf16 %v1783, %v1780
    %v1851 = vpack.c.bf16 %v1791, %v1788
    %v1852 = vpack.c.bf16 %v1799, %v1796
    %v1853 = vpack.c.bf16 %v1807, %v1804
    %v1854 = vpack.c.bf16 %v1815, %v1812
    %v1855 = vpack.c.bf16 %v1823, %v1820
    %v1856 = vpack.c.bf16 %v1831, %v1828
    %v1857 = vpack.c.bf16 %v1839, %v1836
    %v1858 = vld [vmem:[#allocation14] sm:$0xf]
    %v1859 = vld [vmem:[#allocation14 + $0x4] sm:$0xf]
    %v1860 = vld [vmem:[#allocation14 + $0x8] sm:$0xf]
    %v1861 = vld [vmem:[#allocation14 + $0xc] sm:$0xf]
    %v1862 = vld [vmem:[#allocation14 + $0x10] sm:$0xf]
    %v1863 = vld [vmem:[#allocation14 + $0x14] sm:$0xf]
    %v1864 = vld [vmem:[#allocation14 + $0x18] sm:$0xf]
    %v1865 = vld [vmem:[#allocation14 + $0x1c] sm:$0xf]
    %v1866 = vld [vmem:[#allocation14 + $0x20] sm:$0xf]
    %v1867 = vld [vmem:[#allocation14 + $0x24] sm:$0xf]
    %v1868 = vld [vmem:[#allocation14 + $0x28] sm:$0xf]
    %v1869 = vld [vmem:[#allocation14 + $0x2c] sm:$0xf]
    %v1870 = vld [vmem:[#allocation14 + $0x30] sm:$0xf]
    %v1871 = vld [vmem:[#allocation14 + $0x34] sm:$0xf]
    %v1872 = vld [vmem:[#allocation14 + $0x38] sm:$0xf]
    %v1873 = vld [vmem:[#allocation14 + $0x3c] sm:$0xf]
    %v1874 = vld [vmem:[#allocation14 + $0x40] sm:$0xf]
    %v1875 = vld [vmem:[#allocation14 + $0x44] sm:$0xf]
    %v1876 = vld [vmem:[#allocation14 + $0x48] sm:$0xf]
    %v1877 = vld [vmem:[#allocation14 + $0x4c] sm:$0xf]
    %v1878 = vld [vmem:[#allocation14 + $0x50] sm:$0xf]
    %v1879 = vld [vmem:[#allocation14 + $0x54] sm:$0xf]
    %v1880 = vld [vmem:[#allocation14 + $0x58] sm:$0xf]
    %v1881 = vld [vmem:[#allocation14 + $0x5c] sm:$0xf]
    %v1882 = vld [vmem:[#allocation14 + $0x60] sm:$0xf]
    %v1883 = vld [vmem:[#allocation14 + $0x64] sm:$0xf]
    %v1884 = vld [vmem:[#allocation14 + $0x68] sm:$0xf]
    %v1885 = vld [vmem:[#allocation14 + $0x6c] sm:$0xf]
    %v1886 = vld [vmem:[#allocation14 + $0x70] sm:$0xf]
    %v1887 = vld [vmem:[#allocation14 + $0x74] sm:$0xf]
    %v1888 = vld [vmem:[#allocation14 + $0x78] sm:$0xf]
    %v1889 = vld [vmem:[#allocation14 + $0x7c] sm:$0xf]
    %1891 = vset.pattern.permute.xlu0 0
    %1892 = vperm.xlu0 %1891, %v1858
    %v1893 = vpop.permute.xlu0 %1892
    %v1896 = vunpack.c.l.s4 839922192
    %v1897 = vunpack.c.0.s8 %v1896
    %v1898 = vlaneseq
    %v1899 = vshrl.u32 %v1898, 7
    %v1900 = vsub.s32 %v1897, %v1899
    %v1901 = vrot.slane %v1893, %v1900
    %1903 = vset.pattern.permute.xlu0 0
    %1904 = vperm.xlu0 %1903, %v1859
    %v1905 = vpop.permute.xlu0 %1904
    %v1908 = vunpack.c.l.s4 839922192
    %v1909 = vunpack.c.0.s8 %v1908
    %v1910 = vlaneseq
    %v1911 = vshrl.u32 %v1910, 7
    %v1912 = vsub.s32 %v1909, %v1911
    %v1913 = vrot.slane %v1905, %v1912
    %1915 = vset.pattern.permute.xlu0 0
    %1916 = vperm.xlu0 %1915, %v1860
    %v1917 = vpop.permute.xlu0 %1916
    %v1920 = vunpack.c.l.s4 839922192
    %v1921 = vunpack.c.0.s8 %v1920
    %v1922 = vlaneseq
    %v1923 = vshrl.u32 %v1922, 7
    %v1924 = vsub.s32 %v1921, %v1923
    %v1925 = vrot.slane %v1917, %v1924
    %1927 = vset.pattern.permute.xlu0 0
    %1928 = vperm.xlu0 %1927, %v1861
    %v1929 = vpop.permute.xlu0 %1928
    %v1932 = vunpack.c.l.s4 839922192
    %v1933 = vunpack.c.0.s8 %v1932
    %v1934 = vlaneseq
    %v1935 = vshrl.u32 %v1934, 7
    %v1936 = vsub.s32 %v1933, %v1935
    %v1937 = vrot.slane %v1929, %v1936
    %1939 = vset.pattern.permute.xlu0 0
    %1940 = vperm.xlu0 %1939, %v1862
    %v1941 = vpop.permute.xlu0 %1940
    %v1944 = vunpack.c.l.s4 839922192
    %v1945 = vunpack.c.0.s8 %v1944
    %v1946 = vlaneseq
    %v1947 = vshrl.u32 %v1946, 7
    %v1948 = vsub.s32 %v1945, %v1947
    %v1949 = vrot.slane %v1941, %v1948
    %1951 = vset.pattern.permute.xlu0 0
    %1952 = vperm.xlu0 %1951, %v1863
    %v1953 = vpop.permute.xlu0 %1952
    %v1956 = vunpack.c.l.s4 839922192
    %v1957 = vunpack.c.0.s8 %v1956
    %v1958 = vlaneseq
    %v1959 = vshrl.u32 %v1958, 7
    %v1960 = vsub.s32 %v1957, %v1959
    %v1961 = vrot.slane %v1953, %v1960
    %1963 = vset.pattern.permute.xlu0 0
    %1964 = vperm.xlu0 %1963, %v1864
    %v1965 = vpop.permute.xlu0 %1964
    %v1968 = vunpack.c.l.s4 839922192
    %v1969 = vunpack.c.0.s8 %v1968
    %v1970 = vlaneseq
    %v1971 = vshrl.u32 %v1970, 7
    %v1972 = vsub.s32 %v1969, %v1971
    %v1973 = vrot.slane %v1965, %v1972
    %1975 = vset.pattern.permute.xlu0 0
    %1976 = vperm.xlu0 %1975, %v1865
    %v1977 = vpop.permute.xlu0 %1976
    %v1980 = vunpack.c.l.s4 839922192
    %v1981 = vunpack.c.0.s8 %v1980
    %v1982 = vlaneseq
    %v1983 = vshrl.u32 %v1982, 7
    %v1984 = vsub.s32 %v1981, %v1983
    %v1985 = vrot.slane %v1977, %v1984
    %1987 = vset.pattern.permute.xlu0 0
    %1988 = vperm.xlu0 %1987, %v1866
    %v1989 = vpop.permute.xlu0 %1988
    %v1992 = vunpack.c.l.s4 839922192
    %v1993 = vunpack.c.0.s8 %v1992
    %v1994 = vlaneseq
    %v1995 = vshrl.u32 %v1994, 7
    %v1996 = vsub.s32 %v1993, %v1995
    %v1997 = vrot.slane %v1989, %v1996
    %1999 = vset.pattern.permute.xlu0 0
    %2000 = vperm.xlu0 %1999, %v1867
    %v2001 = vpop.permute.xlu0 %2000
    %v2004 = vunpack.c.l.s4 839922192
    %v2005 = vunpack.c.0.s8 %v2004
    %v2006 = vlaneseq
    %v2007 = vshrl.u32 %v2006, 7
    %v2008 = vsub.s32 %v2005, %v2007
    %v2009 = vrot.slane %v2001, %v2008
    %2011 = vset.pattern.permute.xlu0 0
    %2012 = vperm.xlu0 %2011, %v1868
    %v2013 = vpop.permute.xlu0 %2012
    %v2016 = vunpack.c.l.s4 839922192
    %v2017 = vunpack.c.0.s8 %v2016
    %v2018 = vlaneseq
    %v2019 = vshrl.u32 %v2018, 7
    %v2020 = vsub.s32 %v2017, %v2019
    %v2021 = vrot.slane %v2013, %v2020
    %2023 = vset.pattern.permute.xlu0 0
    %2024 = vperm.xlu0 %2023, %v1869
    %v2025 = vpop.permute.xlu0 %2024
    %v2028 = vunpack.c.l.s4 839922192
    %v2029 = vunpack.c.0.s8 %v2028
    %v2030 = vlaneseq
    %v2031 = vshrl.u32 %v2030, 7
    %v2032 = vsub.s32 %v2029, %v2031
    %v2033 = vrot.slane %v2025, %v2032
    %2035 = vset.pattern.permute.xlu0 0
    %2036 = vperm.xlu0 %2035, %v1870
    %v2037 = vpop.permute.xlu0 %2036
    %v2040 = vunpack.c.l.s4 839922192
    %v2041 = vunpack.c.0.s8 %v2040
    %v2042 = vlaneseq
    %v2043 = vshrl.u32 %v2042, 7
    %v2044 = vsub.s32 %v2041, %v2043
    %v2045 = vrot.slane %v2037, %v2044
    %2047 = vset.pattern.permute.xlu0 0
    %2048 = vperm.xlu0 %2047, %v1871
    %v2049 = vpop.permute.xlu0 %2048
    %v2052 = vunpack.c.l.s4 839922192
    %v2053 = vunpack.c.0.s8 %v2052
    %v2054 = vlaneseq
    %v2055 = vshrl.u32 %v2054, 7
    %v2056 = vsub.s32 %v2053, %v2055
    %v2057 = vrot.slane %v2049, %v2056
    %2059 = vset.pattern.permute.xlu0 0
    %2060 = vperm.xlu0 %2059, %v1872
    %v2061 = vpop.permute.xlu0 %2060
    %v2064 = vunpack.c.l.s4 839922192
    %v2065 = vunpack.c.0.s8 %v2064
    %v2066 = vlaneseq
    %v2067 = vshrl.u32 %v2066, 7
    %v2068 = vsub.s32 %v2065, %v2067
    %v2069 = vrot.slane %v2061, %v2068
    %2071 = vset.pattern.permute.xlu0 0
    %2072 = vperm.xlu0 %2071, %v1873
    %v2073 = vpop.permute.xlu0 %2072
    %v2076 = vunpack.c.l.s4 839922192
    %v2077 = vunpack.c.0.s8 %v2076
    %v2078 = vlaneseq
    %v2079 = vshrl.u32 %v2078, 7
    %v2080 = vsub.s32 %v2077, %v2079
    %v2081 = vrot.slane %v2073, %v2080
    %2083 = vset.pattern.permute.xlu0 0
    %2084 = vperm.xlu0 %2083, %v1874
    %v2085 = vpop.permute.xlu0 %2084
    %v2088 = vunpack.c.l.s4 839922192
    %v2089 = vunpack.c.0.s8 %v2088
    %v2090 = vlaneseq
    %v2091 = vshrl.u32 %v2090, 7
    %v2092 = vsub.s32 %v2089, %v2091
    %v2093 = vrot.slane %v2085, %v2092
    %2095 = vset.pattern.permute.xlu0 0
    %2096 = vperm.xlu0 %2095, %v1875
    %v2097 = vpop.permute.xlu0 %2096
    %v2100 = vunpack.c.l.s4 839922192
    %v2101 = vunpack.c.0.s8 %v2100
    %v2102 = vlaneseq
    %v2103 = vshrl.u32 %v2102, 7
    %v2104 = vsub.s32 %v2101, %v2103
    %v2105 = vrot.slane %v2097, %v2104
    %2107 = vset.pattern.permute.xlu0 0
    %2108 = vperm.xlu0 %2107, %v1876
    %v2109 = vpop.permute.xlu0 %2108
    %v2112 = vunpack.c.l.s4 839922192
    %v2113 = vunpack.c.0.s8 %v2112
    %v2114 = vlaneseq
    %v2115 = vshrl.u32 %v2114, 7
    %v2116 = vsub.s32 %v2113, %v2115
    %v2117 = vrot.slane %v2109, %v2116
    %2119 = vset.pattern.permute.xlu0 0
    %2120 = vperm.xlu0 %2119, %v1877
    %v2121 = vpop.permute.xlu0 %2120
    %v2124 = vunpack.c.l.s4 839922192
    %v2125 = vunpack.c.0.s8 %v2124
    %v2126 = vlaneseq
    %v2127 = vshrl.u32 %v2126, 7
    %v2128 = vsub.s32 %v2125, %v2127
    %v2129 = vrot.slane %v2121, %v2128
    %2131 = vset.pattern.permute.xlu0 0
    %2132 = vperm.xlu0 %2131, %v1878
    %v2133 = vpop.permute.xlu0 %2132
    %v2136 = vunpack.c.l.s4 839922192
    %v2137 = vunpack.c.0.s8 %v2136
    %v2138 = vlaneseq
    %v2139 = vshrl.u32 %v2138, 7
    %v2140 = vsub.s32 %v2137, %v2139
    %v2141 = vrot.slane %v2133, %v2140
    %2143 = vset.pattern.permute.xlu0 0
    %2144 = vperm.xlu0 %2143, %v1879
    %v2145 = vpop.permute.xlu0 %2144
    %v2148 = vunpack.c.l.s4 839922192
    %v2149 = vunpack.c.0.s8 %v2148
    %v2150 = vlaneseq
    %v2151 = vshrl.u32 %v2150, 7
    %v2152 = vsub.s32 %v2149, %v2151
    %v2153 = vrot.slane %v2145, %v2152
    %2155 = vset.pattern.permute.xlu0 0
    %2156 = vperm.xlu0 %2155, %v1880
    %v2157 = vpop.permute.xlu0 %2156
    %v2160 = vunpack.c.l.s4 839922192
    %v2161 = vunpack.c.0.s8 %v2160
    %v2162 = vlaneseq
    %v2163 = vshrl.u32 %v2162, 7
    %v2164 = vsub.s32 %v2161, %v2163
    %v2165 = vrot.slane %v2157, %v2164
    %2167 = vset.pattern.permute.xlu0 0
    %2168 = vperm.xlu0 %2167, %v1881
    %v2169 = vpop.permute.xlu0 %2168
    %v2172 = vunpack.c.l.s4 839922192
    %v2173 = vunpack.c.0.s8 %v2172
    %v2174 = vlaneseq
    %v2175 = vshrl.u32 %v2174, 7
    %v2176 = vsub.s32 %v2173, %v2175
    %v2177 = vrot.slane %v2169, %v2176
    %2179 = vset.pattern.permute.xlu0 0
    %2180 = vperm.xlu0 %2179, %v1882
    %v2181 = vpop.permute.xlu0 %2180
    %v2184 = vunpack.c.l.s4 839922192
    %v2185 = vunpack.c.0.s8 %v2184
    %v2186 = vlaneseq
    %v2187 = vshrl.u32 %v2186, 7
    %v2188 = vsub.s32 %v2185, %v2187
    %v2189 = vrot.slane %v2181, %v2188
    %2191 = vset.pattern.permute.xlu0 0
    %2192 = vperm.xlu0 %2191, %v1883
    %v2193 = vpop.permute.xlu0 %2192
    %v2196 = vunpack.c.l.s4 839922192
    %v2197 = vunpack.c.0.s8 %v2196
    %v2198 = vlaneseq
    %v2199 = vshrl.u32 %v2198, 7
    %v2200 = vsub.s32 %v2197, %v2199
    %v2201 = vrot.slane %v2193, %v2200
    %2203 = vset.pattern.permute.xlu0 0
    %2204 = vperm.xlu0 %2203, %v1884
    %v2205 = vpop.permute.xlu0 %2204
    %v2208 = vunpack.c.l.s4 839922192
    %v2209 = vunpack.c.0.s8 %v2208
    %v2210 = vlaneseq
    %v2211 = vshrl.u32 %v2210, 7
    %v2212 = vsub.s32 %v2209, %v2211
    %v2213 = vrot.slane %v2205, %v2212
    %2215 = vset.pattern.permute.xlu0 0
    %2216 = vperm.xlu0 %2215, %v1885
    %v2217 = vpop.permute.xlu0 %2216
    %v2220 = vunpack.c.l.s4 839922192
    %v2221 = vunpack.c.0.s8 %v2220
    %v2222 = vlaneseq
    %v2223 = vshrl.u32 %v2222, 7
    %v2224 = vsub.s32 %v2221, %v2223
    %v2225 = vrot.slane %v2217, %v2224
    %2227 = vset.pattern.permute.xlu0 0
    %2228 = vperm.xlu0 %2227, %v1886
    %v2229 = vpop.permute.xlu0 %2228
    %v2232 = vunpack.c.l.s4 839922192
    %v2233 = vunpack.c.0.s8 %v2232
    %v2234 = vlaneseq
    %v2235 = vshrl.u32 %v2234, 7
    %v2236 = vsub.s32 %v2233, %v2235
    %v2237 = vrot.slane %v2229, %v2236
    %2239 = vset.pattern.permute.xlu0 0
    %2240 = vperm.xlu0 %2239, %v1887
    %v2241 = vpop.permute.xlu0 %2240
    %v2244 = vunpack.c.l.s4 839922192
    %v2245 = vunpack.c.0.s8 %v2244
    %v2246 = vlaneseq
    %v2247 = vshrl.u32 %v2246, 7
    %v2248 = vsub.s32 %v2245, %v2247
    %v2249 = vrot.slane %v2241, %v2248
    %2251 = vset.pattern.permute.xlu0 0
    %2252 = vperm.xlu0 %2251, %v1888
    %v2253 = vpop.permute.xlu0 %2252
    %v2256 = vunpack.c.l.s4 839922192
    %v2257 = vunpack.c.0.s8 %v2256
    %v2258 = vlaneseq
    %v2259 = vshrl.u32 %v2258, 7
    %v2260 = vsub.s32 %v2257, %v2259
    %v2261 = vrot.slane %v2253, %v2260
    %2263 = vset.pattern.permute.xlu0 0
    %2264 = vperm.xlu0 %2263, %v1889
    %v2265 = vpop.permute.xlu0 %2264
    %v2268 = vunpack.c.l.s4 839922192
    %v2269 = vunpack.c.0.s8 %v2268
    %v2270 = vlaneseq
    %v2271 = vshrl.u32 %v2270, 7
    %v2272 = vsub.s32 %v2269, %v2271
    %v2273 = vrot.slane %v2265, %v2272
    %v2306 = vunpack.c.l.b16 %v1901
    %v2307 = vunpack.c.l.b16 %v1913
    %v2308 = vunpack.c.l.b16 %v1925
    %v2309 = vunpack.c.l.b16 %v1937
    %v2310 = vunpack.c.l.b16 %v1949
    %v2311 = vunpack.c.l.b16 %v1961
    %v2312 = vunpack.c.l.b16 %v1973
    %v2313 = vunpack.c.l.b16 %v1985
    %v2314 = vunpack.c.l.b16 %v1997
    %v2315 = vunpack.c.l.b16 %v2009
    %v2316 = vunpack.c.l.b16 %v2021
    %v2317 = vunpack.c.l.b16 %v2033
    %v2318 = vunpack.c.l.b16 %v2045
    %v2319 = vunpack.c.l.b16 %v2057
    %v2320 = vunpack.c.l.b16 %v2069
    %v2321 = vunpack.c.l.b16 %v2081
    %v2322 = vunpack.c.l.b16 %v2093
    %v2323 = vunpack.c.l.b16 %v2105
    %v2324 = vunpack.c.l.b16 %v2117
    %v2325 = vunpack.c.l.b16 %v2129
    %v2326 = vunpack.c.l.b16 %v2141
    %v2327 = vunpack.c.l.b16 %v2153
    %v2328 = vunpack.c.l.b16 %v2165
    %v2329 = vunpack.c.l.b16 %v2177
    %v2330 = vunpack.c.l.b16 %v2189
    %v2331 = vunpack.c.l.b16 %v2201
    %v2332 = vunpack.c.l.b16 %v2213
    %v2333 = vunpack.c.l.b16 %v2225
    %v2334 = vunpack.c.l.b16 %v2237
    %v2335 = vunpack.c.l.b16 %v2249
    %v2336 = vunpack.c.l.b16 %v2261
    %v2337 = vunpack.c.l.b16 %v2273
    %v2338 = vpack.c.b16 %v2307, %v2306
    %v2339 = vpack.c.b16 %v2309, %v2308
    %v2340 = vpack.c.b16 %v2311, %v2310
    %v2341 = vpack.c.b16 %v2313, %v2312
    %v2342 = vpack.c.b16 %v2315, %v2314
    %v2343 = vpack.c.b16 %v2317, %v2316
    %v2344 = vpack.c.b16 %v2319, %v2318
    %v2345 = vpack.c.b16 %v2321, %v2320
    %v2346 = vpack.c.b16 %v2323, %v2322
    %v2347 = vpack.c.b16 %v2325, %v2324
    %v2348 = vpack.c.b16 %v2327, %v2326
    %v2349 = vpack.c.b16 %v2329, %v2328
    %v2350 = vpack.c.b16 %v2331, %v2330
    %v2351 = vpack.c.b16 %v2333, %v2332
    %v2352 = vpack.c.b16 %v2335, %v2334
    %v2353 = vpack.c.b16 %v2337, %v2336
    %v2370 = vadd.bf16 %v1842, %v2338
    %v2371 = vadd.bf16 %v1843, %v2339
    %v2372 = vadd.bf16 %v1844, %v2340
    %v2373 = vadd.bf16 %v1845, %v2341
    %v2374 = vadd.bf16 %v1846, %v2342
    %v2375 = vadd.bf16 %v1847, %v2343
    %v2376 = vadd.bf16 %v1848, %v2344
    %v2377 = vadd.bf16 %v1849, %v2345
    %v2378 = vadd.bf16 %v1850, %v2346
    %v2379 = vadd.bf16 %v1851, %v2347
    %v2380 = vadd.bf16 %v1852, %v2348
    %v2381 = vadd.bf16 %v1853, %v2349
    %v2382 = vadd.bf16 %v1854, %v2350
    %v2383 = vadd.bf16 %v1855, %v2351
    %v2384 = vadd.bf16 %v1856, %v2352
    %v2385 = vadd.bf16 %v1857, %v2353
    %v2386 = vmax.bf16 %v2370, 0
    %v2387 = vmax.bf16 %v2371, 0
    %v2388 = vmax.bf16 %v2372, 0
    %v2389 = vmax.bf16 %v2373, 0
    %v2390 = vmax.bf16 %v2374, 0
    %v2391 = vmax.bf16 %v2375, 0
    %v2392 = vmax.bf16 %v2376, 0
    %v2393 = vmax.bf16 %v2377, 0
    %v2394 = vmax.bf16 %v2378, 0
    %v2395 = vmax.bf16 %v2379, 0
    %v2396 = vmax.bf16 %v2380, 0
    %v2397 = vmax.bf16 %v2381, 0
    %v2398 = vmax.bf16 %v2382, 0
    %v2399 = vmax.bf16 %v2383, 0
    %v2400 = vmax.bf16 %v2384, 0
    %v2401 = vmax.bf16 %v2385, 0
    %v2402 = vld [vmem:[#allocation15] sm:$0xff]
    %v2403 = vld [vmem:[#allocation15 + $0x8] sm:$0xff]
    %v2404 = vld [vmem:[#allocation15 + $0x10] sm:$0xff]
    %v2405 = vld [vmem:[#allocation15 + $0x18] sm:$0xff]
    %v2406 = vld [vmem:[#allocation15 + $0x20] sm:$0xff]
    %v2407 = vld [vmem:[#allocation15 + $0x28] sm:$0xff]
    %v2408 = vld [vmem:[#allocation15 + $0x30] sm:$0xff]
    %v2409 = vld [vmem:[#allocation15 + $0x38] sm:$0xff]
    %v2410 = vld [vmem:[#allocation15 + $0x40] sm:$0xff]
    %v2411 = vld [vmem:[#allocation15 + $0x48] sm:$0xff]
    %v2412 = vld [vmem:[#allocation15 + $0x50] sm:$0xff]
    %v2413 = vld [vmem:[#allocation15 + $0x58] sm:$0xff]
    %v2414 = vld [vmem:[#allocation15 + $0x60] sm:$0xff]
    %v2415 = vld [vmem:[#allocation15 + $0x68] sm:$0xff]
    %v2416 = vld [vmem:[#allocation15 + $0x70] sm:$0xff]
    %v2417 = vld [vmem:[#allocation15 + $0x78] sm:$0xff]
    %v2434 = vunpack.c.l.b16 %v2402
    %v2435 = vunpack.c.h.b16 %v2402
    %v2436 = vunpack.c.l.b16 %v2403
    %v2437 = vunpack.c.h.b16 %v2403
    %v2438 = vunpack.c.l.b16 %v2404
    %v2439 = vunpack.c.h.b16 %v2404
    %v2440 = vunpack.c.l.b16 %v2405
    %v2441 = vunpack.c.h.b16 %v2405
    %v2442 = vunpack.c.l.b16 %v2406
    %v2443 = vunpack.c.h.b16 %v2406
    %v2444 = vunpack.c.l.b16 %v2407
    %v2445 = vunpack.c.h.b16 %v2407
    %v2446 = vunpack.c.l.b16 %v2408
    %v2447 = vunpack.c.h.b16 %v2408
    %v2448 = vunpack.c.l.b16 %v2409
    %v2449 = vunpack.c.h.b16 %v2409
    %v2450 = vunpack.c.l.b16 %v2410
    %v2451 = vunpack.c.h.b16 %v2410
    %v2452 = vunpack.c.l.b16 %v2411
    %v2453 = vunpack.c.h.b16 %v2411
    %v2454 = vunpack.c.l.b16 %v2412
    %v2455 = vunpack.c.h.b16 %v2412
    %v2456 = vunpack.c.l.b16 %v2413
    %v2457 = vunpack.c.h.b16 %v2413
    %v2458 = vunpack.c.l.b16 %v2414
    %v2459 = vunpack.c.h.b16 %v2414
    %v2460 = vunpack.c.l.b16 %v2415
    %v2461 = vunpack.c.h.b16 %v2415
    %v2462 = vunpack.c.l.b16 %v2416
    %v2463 = vunpack.c.h.b16 %v2416
    %v2464 = vunpack.c.l.b16 %v2417
    %v2465 = vunpack.c.h.b16 %v2417
    %v2466 = vpack.c.b16 %v2436, %v2434
    %v2467 = vpack.c.b16 %v2437, %v2435
    %v2468 = vpack.c.b16 %v2440, %v2438
    %v2469 = vpack.c.b16 %v2441, %v2439
    %v2470 = vpack.c.b16 %v2444, %v2442
    %v2471 = vpack.c.b16 %v2445, %v2443
    %v2472 = vpack.c.b16 %v2448, %v2446
    %v2473 = vpack.c.b16 %v2449, %v2447
    %v2474 = vpack.c.b16 %v2452, %v2450
    %v2475 = vpack.c.b16 %v2453, %v2451
    %v2476 = vpack.c.b16 %v2456, %v2454
    %v2477 = vpack.c.b16 %v2457, %v2455
    %v2478 = vpack.c.b16 %v2460, %v2458
    %v2479 = vpack.c.b16 %v2461, %v2459
    %v2480 = vpack.c.b16 %v2464, %v2462
    %v2481 = vpack.c.b16 %v2465, %v2463
    %2498 = vmatprep.subr.bf16.mxu0 0
    %2499 = vmatpush1.bf16.msra.mxu0 %v2386
    %2500 = vmatprep.subr.bf16.mxu0 0
    %2501 = vmatpush1.bf16.msra.mxu0 %v2387
    %2502 = vmatprep.subr.bf16.mxu0 0
    %2503 = vmatpush1.bf16.msra.mxu0 %v2388
    %2504 = vmatprep.subr.bf16.mxu0 0
    %2505 = vmatpush1.bf16.msra.mxu0 %v2389
    %2506 = vmatprep.subr.bf16.mxu0 0
    %2507 = vmatpush1.bf16.msra.mxu0 %v2390
    %2508 = vmatprep.subr.bf16.mxu0 0
    %2509 = vmatpush1.bf16.msra.mxu0 %v2391
    %2510 = vmatprep.subr.bf16.mxu0 0
    %2511 = vmatpush1.bf16.msra.mxu0 %v2392
    %2512 = vmatprep.subr.bf16.mxu0 0
    %2513 = vmatpush1.bf16.msra.mxu0 %v2393
    %2514 = vmatprep.subr.bf16.mxu0 0
    %2515 = vmatpush1.bf16.msra.mxu0 %v2394
    %2516 = vmatprep.subr.bf16.mxu0 0
    %2517 = vmatpush1.bf16.msra.mxu0 %v2395
    %2518 = vmatprep.subr.bf16.mxu0 0
    %2519 = vmatpush1.bf16.msra.mxu0 %v2396
    %2520 = vmatprep.subr.bf16.mxu0 0
    %2521 = vmatpush1.bf16.msra.mxu0 %v2397
    %2522 = vmatprep.subr.bf16.mxu0 0
    %2523 = vmatpush1.bf16.msra.mxu0 %v2398
    %2524 = vmatprep.subr.bf16.mxu0 0
    %2525 = vmatpush1.bf16.msra.mxu0 %v2399
    %2526 = vmatprep.subr.bf16.mxu0 0
    %2527 = vmatpush1.bf16.msra.mxu0 %v2400
    %2528 = vmatprep.subr.bf16.mxu0 0
    %2529 = vmatpush1.bf16.msra.mxu0 %v2401
    %2530 = vmatprep.mubr.bf16.mxu0 %v2467
    %2531 = vmatmul.mubr.bf16.gmra.mrb[0].mxu0 %v2466
    %v2532 = vpop.f32.mrb[0].mxu0
    %v2533 = vadd.f32 0.0, %v2532
    %v2534 = vpop.f32.mrb[0].mxu0
    %v2535 = vpop.f32.mrb[0].mxu0
    %v2536 = vadd.f32 0.0, %v2535
    %v2537 = vpop.f32.mrb[0].mxu0
    %2538 = vmatprep.mubr.bf16.mxu0 %v2469
    %2539 = vmatmul.mubr.bf16.gmra.mrb[0].mxu0 %v2468
    %v2540 = vpop.f32.mrb[0].mxu0
    %v2541 = vadd.f32 0.0, %v2540
    %v2542 = vpop.f32.mrb[0].mxu0
    %v2543 = vpop.f32.mrb[0].mxu0
    %v2544 = vadd.f32 0.0, %v2543
    %v2545 = vpop.f32.mrb[0].mxu0
    %2546 = vmatprep.mubr.bf16.mxu0 %v2471
    %2547 = vmatmul.mubr.bf16.gmra.mrb[0].mxu0 %v2470
    %v2548 = vpop.f32.mrb[0].mxu0
    %v2549 = vadd.f32 0.0, %v2548
    %v2550 = vpop.f32.mrb[0].mxu0
    %v2551 = vpop.f32.mrb[0].mxu0
    %v2552 = vadd.f32 0.0, %v2551
    %v2553 = vpop.f32.mrb[0].mxu0
    %2554 = vmatprep.mubr.bf16.mxu0 %v2473
    %2555 = vmatmul.mubr.bf16.gmra.mrb[0].mxu0 %v2472
    %v2556 = vpop.f32.mrb[0].mxu0
    %v2557 = vadd.f32 0.0, %v2556
    %v2558 = vpop.f32.mrb[0].mxu0
    %v2559 = vpop.f32.mrb[0].mxu0
    %v2560 = vadd.f32 0.0, %v2559
    %v2561 = vpop.f32.mrb[0].mxu0
    %2562 = vmatprep.mubr.bf16.mxu0 %v2475
    %2563 = vmatmul.mubr.bf16.gmra.mrb[0].mxu0 %v2474
    %v2564 = vpop.f32.mrb[0].mxu0
    %v2565 = vadd.f32 0.0, %v2564
    %v2566 = vpop.f32.mrb[0].mxu0
    %v2567 = vpop.f32.mrb[0].mxu0
    %v2568 = vadd.f32 0.0, %v2567
    %v2569 = vpop.f32.mrb[0].mxu0
    %2570 = vmatprep.mubr.bf16.mxu0 %v2477
    %2571 = vmatmul.mubr.bf16.gmra.mrb[0].mxu0 %v2476
    %v2572 = vpop.f32.mrb[0].mxu0
    %v2573 = vadd.f32 0.0, %v2572
    %v2574 = vpop.f32.mrb[0].mxu0
    %v2575 = vpop.f32.mrb[0].mxu0
    %v2576 = vadd.f32 0.0, %v2575
    %v2577 = vpop.f32.mrb[0].mxu0
    %2578 = vmatprep.mubr.bf16.mxu0 %v2479
    %2579 = vmatmul.mubr.bf16.gmra.mrb[0].mxu0 %v2478
    %v2580 = vpop.f32.mrb[0].mxu0
    %v2581 = vadd.f32 0.0, %v2580
    %v2582 = vpop.f32.mrb[0].mxu0
    %v2583 = vpop.f32.mrb[0].mxu0
    %v2584 = vadd.f32 0.0, %v2583
    %v2585 = vpop.f32.mrb[0].mxu0
    %2586 = vmatprep.mubr.bf16.mxu0 %v2481
    %2587 = vmatmul.mubr.bf16.gmra.mrb[0].mxu0 %v2480
    %v2588 = vpop.f32.mrb[0].mxu0
    %v2589 = vadd.f32 0.0, %v2588
    %v2590 = vpop.f32.mrb[0].mxu0
    %v2591 = vpop.f32.mrb[0].mxu0
    %v2592 = vadd.f32 0.0, %v2591
    %v2593 = vpop.f32.mrb[0].mxu0
    %2594 = vdwg.mxu0
    %v2595 = vpack.c.bf16 %v2536, %v2533
    %v2596 = vpack.c.bf16 %v2544, %v2541
    %v2597 = vpack.c.bf16 %v2552, %v2549
    %v2598 = vpack.c.bf16 %v2560, %v2557
    %v2599 = vpack.c.bf16 %v2568, %v2565
    %v2600 = vpack.c.bf16 %v2576, %v2573
    %v2601 = vpack.c.bf16 %v2584, %v2581
    %v2602 = vpack.c.bf16 %v2592, %v2589
    %v2603 = vld [vmem:[#allocation17] sm:$0xf]
    %v2604 = vld [vmem:[#allocation17 + $0x4] sm:$0xf]
    %v2605 = vld [vmem:[#allocation17 + $0x8] sm:$0xf]
    %v2606 = vld [vmem:[#allocation17 + $0xc] sm:$0xf]
    %v2607 = vld [vmem:[#allocation17 + $0x10] sm:$0xf]
    %v2608 = vld [vmem:[#allocation17 + $0x14] sm:$0xf]
    %v2609 = vld [vmem:[#allocation17 + $0x18] sm:$0xf]
    %v2610 = vld [vmem:[#allocation17 + $0x1c] sm:$0xf]
    %v2611 = vld [vmem:[#allocation17 + $0x20] sm:$0xf]
    %v2612 = vld [vmem:[#allocation17 + $0x24] sm:$0xf]
    %v2613 = vld [vmem:[#allocation17 + $0x28] sm:$0xf]
    %v2614 = vld [vmem:[#allocation17 + $0x2c] sm:$0xf]
    %v2615 = vld [vmem:[#allocation17 + $0x30] sm:$0xf]
    %v2616 = vld [vmem:[#allocation17 + $0x34] sm:$0xf]
    %v2617 = vld [vmem:[#allocation17 + $0x38] sm:$0xf]
    %v2618 = vld [vmem:[#allocation17 + $0x3c] sm:$0xf]
    %2620 = vset.pattern.permute.xlu0 0
    %2621 = vperm.xlu0 %2620, %v2603
    %v2622 = vpop.permute.xlu0 %2621
    %v2625 = vunpack.c.l.s4 839922192
    %v2626 = vunpack.c.0.s8 %v2625
    %v2627 = vlaneseq
    %v2628 = vshrl.u32 %v2627, 7
    %v2629 = vsub.s32 %v2626, %v2628
    %v2630 = vrot.slane %v2622, %v2629
    %2632 = vset.pattern.permute.xlu0 0
    %2633 = vperm.xlu0 %2632, %v2604
    %v2634 = vpop.permute.xlu0 %2633
    %v2637 = vunpack.c.l.s4 839922192
    %v2638 = vunpack.c.0.s8 %v2637
    %v2639 = vlaneseq
    %v2640 = vshrl.u32 %v2639, 7
    %v2641 = vsub.s32 %v2638, %v2640
    %v2642 = vrot.slane %v2634, %v2641
    %2644 = vset.pattern.permute.xlu0 0
    %2645 = vperm.xlu0 %2644, %v2605
    %v2646 = vpop.permute.xlu0 %2645
    %v2649 = vunpack.c.l.s4 839922192
    %v2650 = vunpack.c.0.s8 %v2649
    %v2651 = vlaneseq
    %v2652 = vshrl.u32 %v2651, 7
    %v2653 = vsub.s32 %v2650, %v2652
    %v2654 = vrot.slane %v2646, %v2653
    %2656 = vset.pattern.permute.xlu0 0
    %2657 = vperm.xlu0 %2656, %v2606
    %v2658 = vpop.permute.xlu0 %2657
    %v2661 = vunpack.c.l.s4 839922192
    %v2662 = vunpack.c.0.s8 %v2661
    %v2663 = vlaneseq
    %v2664 = vshrl.u32 %v2663, 7
    %v2665 = vsub.s32 %v2662, %v2664
    %v2666 = vrot.slane %v2658, %v2665
    %2668 = vset.pattern.permute.xlu0 0
    %2669 = vperm.xlu0 %2668, %v2607
    %v2670 = vpop.permute.xlu0 %2669
    %v2673 = vunpack.c.l.s4 839922192
    %v2674 = vunpack.c.0.s8 %v2673
    %v2675 = vlaneseq
    %v2676 = vshrl.u32 %v2675, 7
    %v2677 = vsub.s32 %v2674, %v2676
    %v2678 = vrot.slane %v2670, %v2677
    %2680 = vset.pattern.permute.xlu0 0
    %2681 = vperm.xlu0 %2680, %v2608
    %v2682 = vpop.permute.xlu0 %2681
    %v2685 = vunpack.c.l.s4 839922192
    %v2686 = vunpack.c.0.s8 %v2685
    %v2687 = vlaneseq
    %v2688 = vshrl.u32 %v2687, 7
    %v2689 = vsub.s32 %v2686, %v2688
    %v2690 = vrot.slane %v2682, %v2689
    %2692 = vset.pattern.permute.xlu0 0
    %2693 = vperm.xlu0 %2692, %v2609
    %v2694 = vpop.permute.xlu0 %2693
    %v2697 = vunpack.c.l.s4 839922192
    %v2698 = vunpack.c.0.s8 %v2697
    %v2699 = vlaneseq
    %v2700 = vshrl.u32 %v2699, 7
    %v2701 = vsub.s32 %v2698, %v2700
    %v2702 = vrot.slane %v2694, %v2701
    %2704 = vset.pattern.permute.xlu0 0
    %2705 = vperm.xlu0 %2704, %v2610
    %v2706 = vpop.permute.xlu0 %2705
    %v2709 = vunpack.c.l.s4 839922192
    %v2710 = vunpack.c.0.s8 %v2709
    %v2711 = vlaneseq
    %v2712 = vshrl.u32 %v2711, 7
    %v2713 = vsub.s32 %v2710, %v2712
    %v2714 = vrot.slane %v2706, %v2713
    %2716 = vset.pattern.permute.xlu0 0
    %2717 = vperm.xlu0 %2716, %v2611
    %v2718 = vpop.permute.xlu0 %2717
    %v2721 = vunpack.c.l.s4 839922192
    %v2722 = vunpack.c.0.s8 %v2721
    %v2723 = vlaneseq
    %v2724 = vshrl.u32 %v2723, 7
    %v2725 = vsub.s32 %v2722, %v2724
    %v2726 = vrot.slane %v2718, %v2725
    %2728 = vset.pattern.permute.xlu0 0
    %2729 = vperm.xlu0 %2728, %v2612
    %v2730 = vpop.permute.xlu0 %2729
    %v2733 = vunpack.c.l.s4 839922192
    %v2734 = vunpack.c.0.s8 %v2733
    %v2735 = vlaneseq
    %v2736 = vshrl.u32 %v2735, 7
    %v2737 = vsub.s32 %v2734, %v2736
    %v2738 = vrot.slane %v2730, %v2737
    %2740 = vset.pattern.permute.xlu0 0
    %2741 = vperm.xlu0 %2740, %v2613
    %v2742 = vpop.permute.xlu0 %2741
    %v2745 = vunpack.c.l.s4 839922192
    %v2746 = vunpack.c.0.s8 %v2745
    %v2747 = vlaneseq
    %v2748 = vshrl.u32 %v2747, 7
    %v2749 = vsub.s32 %v2746, %v2748
    %v2750 = vrot.slane %v2742, %v2749
    %2752 = vset.pattern.permute.xlu0 0
    %2753 = vperm.xlu0 %2752, %v2614
    %v2754 = vpop.permute.xlu0 %2753
    %v2757 = vunpack.c.l.s4 839922192
    %v2758 = vunpack.c.0.s8 %v2757
    %v2759 = vlaneseq
    %v2760 = vshrl.u32 %v2759, 7
    %v2761 = vsub.s32 %v2758, %v2760
    %v2762 = vrot.slane %v2754, %v2761
    %2764 = vset.pattern.permute.xlu0 0
    %2765 = vperm.xlu0 %2764, %v2615
    %v2766 = vpop.permute.xlu0 %2765
    %v2769 = vunpack.c.l.s4 839922192
    %v2770 = vunpack.c.0.s8 %v2769
    %v2771 = vlaneseq
    %v2772 = vshrl.u32 %v2771, 7
    %v2773 = vsub.s32 %v2770, %v2772
    %v2774 = vrot.slane %v2766, %v2773
    %2776 = vset.pattern.permute.xlu0 0
    %2777 = vperm.xlu0 %2776, %v2616
    %v2778 = vpop.permute.xlu0 %2777
    %v2781 = vunpack.c.l.s4 839922192
    %v2782 = vunpack.c.0.s8 %v2781
    %v2783 = vlaneseq
    %v2784 = vshrl.u32 %v2783, 7
    %v2785 = vsub.s32 %v2782, %v2784
    %v2786 = vrot.slane %v2778, %v2785
    %2788 = vset.pattern.permute.xlu0 0
    %2789 = vperm.xlu0 %2788, %v2617
    %v2790 = vpop.permute.xlu0 %2789
    %v2793 = vunpack.c.l.s4 839922192
    %v2794 = vunpack.c.0.s8 %v2793
    %v2795 = vlaneseq
    %v2796 = vshrl.u32 %v2795, 7
    %v2797 = vsub.s32 %v2794, %v2796
    %v2798 = vrot.slane %v2790, %v2797
    %2800 = vset.pattern.permute.xlu0 0
    %2801 = vperm.xlu0 %2800, %v2618
    %v2802 = vpop.permute.xlu0 %2801
    %v2805 = vunpack.c.l.s4 839922192
    %v2806 = vunpack.c.0.s8 %v2805
    %v2807 = vlaneseq
    %v2808 = vshrl.u32 %v2807, 7
    %v2809 = vsub.s32 %v2806, %v2808
    %v2810 = vrot.slane %v2802, %v2809
    %v2827 = vunpack.c.l.b16 %v2630
    %v2828 = vunpack.c.l.b16 %v2642
    %v2829 = vunpack.c.l.b16 %v2654
    %v2830 = vunpack.c.l.b16 %v2666
    %v2831 = vunpack.c.l.b16 %v2678
    %v2832 = vunpack.c.l.b16 %v2690
    %v2833 = vunpack.c.l.b16 %v2702
    %v2834 = vunpack.c.l.b16 %v2714
    %v2835 = vunpack.c.l.b16 %v2726
    %v2836 = vunpack.c.l.b16 %v2738
    %v2837 = vunpack.c.l.b16 %v2750
    %v2838 = vunpack.c.l.b16 %v2762
    %v2839 = vunpack.c.l.b16 %v2774
    %v2840 = vunpack.c.l.b16 %v2786
    %v2841 = vunpack.c.l.b16 %v2798
    %v2842 = vunpack.c.l.b16 %v2810
    %v2843 = vpack.c.b16 %v2828, %v2827
    %v2844 = vpack.c.b16 %v2830, %v2829
    %v2845 = vpack.c.b16 %v2832, %v2831
    %v2846 = vpack.c.b16 %v2834, %v2833
    %v2847 = vpack.c.b16 %v2836, %v2835
    %v2848 = vpack.c.b16 %v2838, %v2837
    %v2849 = vpack.c.b16 %v2840, %v2839
    %v2850 = vpack.c.b16 %v2842, %v2841
    %v2859 = vadd.bf16 %v2595, %v2843
    %v2860 = vadd.bf16 %v2596, %v2844
    %v2861 = vadd.bf16 %v2597, %v2845
    %v2862 = vadd.bf16 %v2598, %v2846
    %v2863 = vadd.bf16 %v2599, %v2847
    %v2864 = vadd.bf16 %v2600, %v2848
    %v2865 = vadd.bf16 %v2601, %v2849
    %v2866 = vadd.bf16 %v2602, %v2850
    %v2867 = vmax.bf16 %v2859, 0
    %v2868 = vmax.bf16 %v2860, 0
    %v2869 = vmax.bf16 %v2861, 0
    %v2870 = vmax.bf16 %v2862, 0
    %v2871 = vmax.bf16 %v2863, 0
    %v2872 = vmax.bf16 %v2864, 0
    %v2873 = vmax.bf16 %v2865, 0
    %v2874 = vmax.bf16 %v2866, 0
    %v2875 = vld [vmem:[#allocation18] sm:$0xff]
    %v2876 = vld [vmem:[#allocation18 + $0x8] sm:$0xff]
    %v2877 = vld [vmem:[#allocation18 + $0x10] sm:$0xff]
    %v2878 = vld [vmem:[#allocation18 + $0x18] sm:$0xff]
    %v2879 = vld [vmem:[#allocation18 + $0x20] sm:$0xff]
    %v2880 = vld [vmem:[#allocation18 + $0x28] sm:$0xff]
    %v2881 = vld [vmem:[#allocation18 + $0x30] sm:$0xff]
    %v2882 = vld [vmem:[#allocation18 + $0x38] sm:$0xff]
    %v2883 = vld [vmem:[#allocation18 + $0x40] sm:$0xff]
    %v2884 = vld [vmem:[#allocation18 + $0x48] sm:$0xff]
    %v2885 = vld [vmem:[#allocation18 + $0x50] sm:$0xff]
    %v2886 = vld [vmem:[#allocation18 + $0x58] sm:$0xff]
    %v2887 = vld [vmem:[#allocation18 + $0x60] sm:$0xff]
    %v2888 = vld [vmem:[#allocation18 + $0x68] sm:$0xff]
    %v2889 = vld [vmem:[#allocation18 + $0x70] sm:$0xff]
    %v2890 = vld [vmem:[#allocation18 + $0x78] sm:$0xff]
    %v2891 = vunpack.c.l.bf16 %v2867
    %v2892 = vunpack.c.h.bf16 %v2867
    %v2893 = vunpack.c.l.bf16 %v2868
    %v2894 = vunpack.c.h.bf16 %v2868
    %v2895 = vunpack.c.l.bf16 %v2869
    %v2896 = vunpack.c.h.bf16 %v2869
    %v2897 = vunpack.c.l.bf16 %v2870
    %v2898 = vunpack.c.h.bf16 %v2870
    %v2899 = vunpack.c.l.bf16 %v2871
    %v2900 = vunpack.c.h.bf16 %v2871
    %v2901 = vunpack.c.l.bf16 %v2872
    %v2902 = vunpack.c.h.bf16 %v2872
    %v2903 = vunpack.c.l.bf16 %v2873
    %v2904 = vunpack.c.h.bf16 %v2873
    %v2905 = vunpack.c.l.bf16 %v2874
    %v2906 = vunpack.c.h.bf16 %v2874
    %2908 = vset.pattern.permute.xlu0 0
    %2909 = vperm.xlu0 %2908, %v2875
    %v2910 = vpop.permute.xlu0 %2909
    %2913 = vset.pattern.permute.xlu0 0
    %2914 = vperm.xlu0 %2913, %v2876
    %v2915 = vpop.permute.xlu0 %2914
    %2918 = vset.pattern.permute.xlu0 0
    %2919 = vperm.xlu0 %2918, %v2877
    %v2920 = vpop.permute.xlu0 %2919
    %2923 = vset.pattern.permute.xlu0 0
    %2924 = vperm.xlu0 %2923, %v2878
    %v2925 = vpop.permute.xlu0 %2924
    %2928 = vset.pattern.permute.xlu0 0
    %2929 = vperm.xlu0 %2928, %v2879
    %v2930 = vpop.permute.xlu0 %2929
    %2933 = vset.pattern.permute.xlu0 0
    %2934 = vperm.xlu0 %2933, %v2880
    %v2935 = vpop.permute.xlu0 %2934
    %2938 = vset.pattern.permute.xlu0 0
    %2939 = vperm.xlu0 %2938, %v2881
    %v2940 = vpop.permute.xlu0 %2939
    %2943 = vset.pattern.permute.xlu0 0
    %2944 = vperm.xlu0 %2943, %v2882
    %v2945 = vpop.permute.xlu0 %2944
    %2948 = vset.pattern.permute.xlu0 0
    %2949 = vperm.xlu0 %2948, %v2883
    %v2950 = vpop.permute.xlu0 %2949
    %2953 = vset.pattern.permute.xlu0 0
    %2954 = vperm.xlu0 %2953, %v2884
    %v2955 = vpop.permute.xlu0 %2954
    %2958 = vset.pattern.permute.xlu0 0
    %2959 = vperm.xlu0 %2958, %v2885
    %v2960 = vpop.permute.xlu0 %2959
    %2963 = vset.pattern.permute.xlu0 0
    %2964 = vperm.xlu0 %2963, %v2886
    %v2965 = vpop.permute.xlu0 %2964
    %2968 = vset.pattern.permute.xlu0 0
    %2969 = vperm.xlu0 %2968, %v2887
    %v2970 = vpop.permute.xlu0 %2969
    %2973 = vset.pattern.permute.xlu0 0
    %2974 = vperm.xlu0 %2973, %v2888
    %v2975 = vpop.permute.xlu0 %2974
    %2978 = vset.pattern.permute.xlu0 0
    %2979 = vperm.xlu0 %2978, %v2889
    %v2980 = vpop.permute.xlu0 %2979
    %2983 = vset.pattern.permute.xlu0 0
    %2984 = vperm.xlu0 %2983, %v2890
    %v2985 = vpop.permute.xlu0 %2984
    %v2987 = vmul.f32 %v2910, %v2891
    %v2988 = vmul.f32 %v2915, %v2892
    %v2989 = vmul.f32 %v2920, %v2893
    %v2990 = vmul.f32 %v2925, %v2894
    %v2991 = vmul.f32 %v2930, %v2895
    %v2992 = vmul.f32 %v2935, %v2896
    %v2993 = vmul.f32 %v2940, %v2897
    %v2994 = vmul.f32 %v2945, %v2898
    %v2995 = vmul.f32 %v2950, %v2899
    %v2996 = vmul.f32 %v2955, %v2900
    %v2997 = vmul.f32 %v2960, %v2901
    %v2998 = vmul.f32 %v2965, %v2902
    %v2999 = vmul.f32 %v2970, %v2903
    %v3000 = vmul.f32 %v2975, %v2904
    %v3001 = vmul.f32 %v2980, %v2905
    %v3002 = vmul.f32 %v2985, %v2906
    %v3003 = vadd.f32 %v2987, %v2988
    %v3004 = vadd.f32 %v3003, %v2989
    %v3005 = vadd.f32 %v3004, %v2990
    %v3006 = vadd.f32 %v3005, %v2991
    %v3007 = vadd.f32 %v3006, %v2992
    %v3008 = vadd.f32 %v3007, %v2993
    %v3009 = vadd.f32 %v3008, %v2994
    %v3010 = vadd.f32 %v3009, %v2995
    %v3011 = vadd.f32 %v3010, %v2996
    %v3012 = vadd.f32 %v3011, %v2997
    %v3013 = vadd.f32 %v3012, %v2998
    %v3014 = vadd.f32 %v3013, %v2999
    %v3015 = vadd.f32 %v3014, %v3000
    %v3016 = vadd.f32 %v3015, %v3001
    %v3017 = vadd.f32 %v3016, %v3002
    %v3018 = vrot.slane %v3017, 4
    %v3019 = vadd.f32 %v3017, %v3018
    %v3020 = vrot.slane %v3019, 2
    %v3021 = vadd.f32 %v3019, %v3020
    %v3022 = vrot.slane %v3021, 1
    %v3023 = vadd.f32 %v3021, %v3022
    %v3024 = vld [vmem:[#allocation2] sm:$0x1]
    %3026 = vset.pattern.permute.xlu0 0
    %3027 = vperm.xlu0 %3026, %v3024
    %v3028 = vpop.permute.xlu0 %3027
    %v3030 = vlaneseq
    %v3031 = vshrl.u32 %v3030, 7
    %v3032 = vsub.s32 0, %v3031
    %v3033 = vrot.slane %v3028, %v3032
    %v3034 = vadd.f32 %v3023, %v3033
    %3035 = vst [vmem:[#allocation20] sm:$0x1] %v3034
    // Predicated region
    $region86: #{simple_mlp_forward.1} parent=1 // pred_check
      _
    $region87: #{simple_mlp_forward.1} parent=1 // pred_check_branch
      %3037 = sbr.rel (0) target = $region89
    $region88: #{simple_mlp_forward.1} parent=1 // pred_region
      %s3039 = ssub.s32 16, 16
      %3040 = vsyncadd [#allocation5], %s3039
      %s3042 = sshll.u32 [#allocation20], 4
      %s3043 = int_to_ptr.vmem [resolvable:$true] %s3042
      %3045 = dma.vmem_to_hbm [thread:$0]  %s3043, 16, %s11, [#allocation5]
    $region89: #{simple_mlp_forward.1} parent=1 // pred_fallthru
      _
    // Predicated region
    $region90: #{simple_mlp_forward.1} parent=1 // pred_check
      _
    $region91: #{simple_mlp_forward.1} parent=1 // pred_check_branch
      %3047 = sbr.rel (0) target = $region93
    $region92: #{simple_mlp_forward.1} parent=1 // pred_region
      %3048 = dma.done [#allocation5], 16
    $region93: #{simple_mlp_forward.1} parent=1 // pred_fallthru
      _
    %3049 = vsyncpa [#allocation4], 1
    %3050 = vsyncpa [#allocation7], 1
    %3051 = vsyncpa [#allocation10], 1
    %3052 = vsyncpa [#allocation13], 1
    %3053 = vsyncpa [#allocation16], 1
    %3054 = vsyncpa [#allocation19], 1
    %3055 = vsyncpa [#allocation5], 1

</llo_original>
